<compile_context>
chip_gen: v5e
topology: v5e:2x2
jax: 0.10.0
libtpu: 0.0.40
codegen_flags: <defaults>
</compile_context>

<pallas_src>
import functools

import jax
import jax.numpy as jnp
from jax.experimental import pallas as pl
from jax.experimental.pallas import tpu as pltpu


_LEAKY_SLOPE = 0.01  # torch.nn.LeakyReLU default negative_slope


def _round_up(a, b):
    return -(-a // b) * b


def _ppg_kernel(x_ref, w0_ref, b0_ref, wmid_ref, bmid_ref, wout_ref, bout_ref,
                o_ref, *, hidden_features, n_mid_layers, use_bf16):
    H = hidden_features
    cdt = jnp.bfloat16 if use_bf16 else jnp.float32

    x = x_ref[...]                       # [TM, C] f32
    emission = x[:, 0:3]                 # lane-0-aligned slice (cheap)

    TM = x.shape[0]
    K = w0_ref.shape[1]                  # H + F

    # LeakyReLU only on the h lanes (0:H); feat lanes (H:K) pass through.
    lane = jax.lax.broadcasted_iota(jnp.int32, (TM, K), 1)
    h_lane = lane < H

    def act(a):
        return jnp.where(jnp.logical_and(h_lane, a < 0.0), _LEAKY_SLOPE * a, a)

    # Layer 0: pos-fold + feat passthrough in a single dot.
    a = jnp.dot(x.astype(cdt), w0_ref[...],
                preferred_element_type=jnp.float32) + b0_ref[...]
    a = act(a)

    # inner + hidden layers: one [TM, K] @ [K, K] dot each (feat carried by
    # the identity block inside the weight).
    for j in range(n_mid_layers):
        a = jnp.dot(a.astype(cdt), wmid_ref[j],
                    preferred_element_type=jnp.float32) + bmid_ref[j]
        a = act(a)

    # outer: Linear(H + F -> O), no activation.
    out = jnp.dot(a.astype(cdt), wout_ref[...],
                  preferred_element_type=jnp.float32) + bout_ref[...]

    # output = where(emission > 1, emission, output + emission)
    o_ref[...] = jnp.where(emission > 1.0, emission, out + emission).astype(o_ref.dtype)


def prepare_ppg_weights(params, num_channels, *, use_bf16=True):
    """Fold the per-layer weights into the fused [h|feat]-buffer form.
    Call once per parameter set (hoisted out of the hot path)."""
    wpos, bpos, win, binn, wh, bh, wout, bout = params
    C = int(num_channels)
    F = C - 3
    H = wpos.shape[1]
    L = wh.shape[0]
    K = H + F
    assert win.shape == (K, H)
    wdt = jnp.bfloat16 if use_bf16 else jnp.float32
    f32 = jnp.float32

    # Layer-0 fused weight [C, K]:
    #   cols 0:H   : rows 6:9 = W_pos (position = x[:, 6:9]), rest zero
    #   cols H:K   : rows 3:3+F = identity (feat passthrough), rest zero
    w0 = jnp.zeros((C, K), f32)
    w0 = w0.at[6:9, 0:H].set(wpos.astype(f32))
    w0 = w0.at[3:3 + F, H:K].set(jnp.eye(F, dtype=f32))
    b0 = jnp.concatenate([bpos.astype(f32), jnp.zeros((1, F), f32)], axis=1)

    # Mid layers (inner + hidden): [K, K] = [W_layer | feat-identity].
    eye_feat = jnp.zeros((K, F), f32).at[H:K, :].set(jnp.eye(F, dtype=f32))
    zeros_b = jnp.zeros((1, F), f32)
    mids_w, mids_b = [], []
    for j in range(L + 1):
        wj = (win if j == 0 else wh[j - 1]).astype(f32)   # [K, H]
        bj = (binn if j == 0 else bh[j - 1]).astype(f32)  # [1, H]
        mids_w.append(jnp.concatenate([wj, eye_feat], axis=1))   # [K, K]
        mids_b.append(jnp.concatenate([bj, zeros_b], axis=1))    # [1, K]
    wmid = jnp.stack(mids_w).astype(wdt)     # [(L+1), K, K]
    bmid = jnp.stack(mids_b)                 # [(L+1), 1, K]  (f32)

    return (w0.astype(wdt), b0, wmid, bmid,
            wout.astype(wdt), bout.astype(f32), H)


def positional_pixel_generator_forward(x, params=None, *, prepared=None,
                                       tile_m=8192, use_bf16=True,
                                       vmem_limit_bytes=None):
    """x: [B, H, W, C] float32, C = 3 + buffers_features + variables_features."""
    B, Hs, Ws, C = x.shape
    assert C >= 9, ("position = input[..., 6:9] requires "
                    "buffers_features + variables_features >= 6")
    N = B * Hs * Ws

    if prepared is None:
        assert params is not None
        prepared = prepare_ppg_weights(params, C, use_bf16=use_bf16)
    w0, b0, wmid, bmid, wout, bout, H = prepared
    K = w0.shape[1]
    n_mid = wmid.shape[0]
    O = wout.shape[1]

    # ---- balanced row tiling ------------------------------------------------
    # >= 2 grid steps so v7x's two TensorCores (parallel axis) both get work;
    # tile sizes balanced so the last (partial) block wastes < 8*num_tiles rows.
    num_tiles = pl.cdiv(N, int(tile_m))
    if N >= 64 and num_tiles < 2:
        num_tiles = 2
    tm = _round_up(pl.cdiv(N, num_tiles), 8)
    grid = pl.cdiv(N, tm)  # last block may be partial; Pallas masks OOB rows

    if vmem_limit_bytes is None:
        # x and out blocks are lane-padded to 128 lanes in VMEM (512 B/row f32),
        # double-buffered -> ~4*tm*512 B, plus (double-buffered) weights.
        wbytes = 2 * (w0.size + wmid.size + wout.size) * (2 if use_bf16 else 4)
        need = 4 * tm * 512 + wbytes + (4 << 20)
        # 64 MiB cap keeps v7x safe; v5e/v6e (128 MiB VMEM) could go higher.
        vmem_limit_bytes = int(min(64 << 20, max(32 << 20, need)))

    xf = x.reshape(N, C)

    kernel = functools.partial(_ppg_kernel, hidden_features=H,
                               n_mid_layers=n_mid, use_bf16=use_bf16)

    out = pl.pallas_call(
        kernel,
        out_shape=jax.ShapeDtypeStruct((N, O), x.dtype),
        grid_spec=pltpu.PrefetchScalarGridSpec(
            num_scalar_prefetch=0,
            grid=(grid,),
            in_specs=[
                pl.BlockSpec((tm, C), lambda i: (i, 0)),              # x rows
                pl.BlockSpec((C, K), lambda i: (0, 0)),               # W0 (pos fold + feat id)
                pl.BlockSpec((1, K), lambda i: (0, 0)),               # b0
                pl.BlockSpec((n_mid, K, K), lambda i: (0, 0, 0)),     # fused mid weights
                pl.BlockSpec((n_mid, 1, K), lambda i: (0, 0, 0)),     # mid biases
                pl.BlockSpec((K, O), lambda i: (0, 0)),               # W_outer
                pl.BlockSpec((1, O), lambda i: (0, 0)),               # b_outer
            ],
            out_specs=pl.BlockSpec((tm, O), lambda i: (i, 0)),
        ),
        compiler_params=pltpu.CompilerParams(
            dimension_semantics=("parallel",),
            vmem_limit_bytes=vmem_limit_bytes),
    )(xf, w0, b0, wmid, bmid, wout, bout)

    return out.reshape(B, Hs, Ws, O)


def init_params(key, buffers_features, variables_features,
                hidden_features, hidden_layers, out_features=3):
    """Deterministic synthetic init matching the PyTorch parameter shapes
    (weights stored [in_features, out_features])."""
    F = buffers_features + variables_features
    H = hidden_features
    ks = jax.random.split(key, 4)

    def linear(k, fan_in, fan_out):
        kw, kb = jax.random.split(k)
        bound = 1.0 / jnp.sqrt(jnp.float32(fan_in))
        w = jax.random.uniform(kw, (fan_in, fan_out), jnp.float32, -bound, bound)
        b = jax.random.uniform(kb, (1, fan_out), jnp.float32, -bound, bound)
        return w, b

    wpos, bpos = linear(ks[0], 3, H)
    win, binn = linear(ks[1], H + F, H)
    wh_list, bh_list = [], []
    for i in range(hidden_layers):
        w, b = linear(jax.random.fold_in(ks[2], i), H + F, H)
        wh_list.append(w)
        bh_list.append(b)
    wh = jnp.stack(wh_list)            # [L, H+F, H]
    bh = jnp.stack(bh_list)            # [L, 1, H]
    wout, bout = linear(ks[3], H + F, out_features)
    return (wpos, bpos, win, binn, wh, bh, wout, bout)


def _leaky(x):
    return jnp.where(x >= 0, x, _LEAKY_SLOPE * x)


def _reference_forward(x, params, use_bf16=True):
    """Pure-JAX reference mirroring the PyTorch forward (for verification).
    With use_bf16=True the dot operands are bf16-cast like the kernel."""
    wpos, bpos, win, binn, wh, bh, wout, bout = params
    cdt = jnp.bfloat16 if use_bf16 else jnp.float32

    def mm(a, w):
        return jnp.dot(a.astype(cdt), w.astype(cdt),
                       preferred_element_type=jnp.float32)

    emission = x[..., 0:3]
    pos = x[..., 6:9]
    feat = x[..., 3:]
    h = _leaky(mm(pos, wpos) + bpos[0])
    h = _leaky(mm(jnp.concatenate([h, feat], -1), win) + binn[0])
    for i in range(wh.shape[0]):
        h = _leaky(mm(jnp.concatenate([h, feat], -1), wh[i]) + bh[i, 0])
    out = mm(jnp.concatenate([h, feat], -1), wout) + bout[0]
    return jnp.where(emission > 1.0, emission, out + emission)


if __name__ == "__main__":
    # Small shapes consistent with the module's forward:
    #   buffers_features=4, variables_features=4  -> F=8, C = 3 + 8 = 11
    #   hidden_features=32, hidden_layers=2, out_features=3
    #   input: [B=2, H=16, W=16, C=11]  (N = 512 rows -> 2 grid steps)
    buffers_features = 4
    variables_features = 4
    hidden_features = 32
    hidden_layers = 2

    key = jax.random.PRNGKey(0)
    k_x, k_p = jax.random.split(key)

    C = 3 + buffers_features + variables_features
    x = jax.random.normal(k_x, (2, 16, 16, C), jnp.float32)

    params = init_params(k_p, buffers_features, variables_features,
                         hidden_features, hidden_layers, out_features=3)

    # Fast path: bf16 dot operands, f32 accumulation (default); weight prep
    # hoisted out of the hot path and reused across calls.
    prepared = prepare_ppg_weights(params, C, use_bf16=True)
    y = positional_pixel_generator_forward(x, prepared=prepared)
    y = jax.block_until_ready(y)
    assert y.shape == (2, 16, 16, 3)
    y_ref_bf16 = _reference_forward(x, params, use_bf16=True)
    assert jnp.allclose(y, y_ref_bf16, atol=3e-2, rtol=3e-2)

    # Exact path: pure f32 semantics (matches the original module numerics).
    y32 = positional_pixel_generator_forward(x, params, use_bf16=False)
    y32 = jax.block_until_ready(y32)
    y_ref32 = _reference_forward(x, params, use_bf16=False)
    assert jnp.allclose(y32, y_ref32, atol=1e-3, rtol=1e-3)

    print("KERNEL_OK")
</pallas_src>

<mosaic_0001>
module attributes {stable_mosaic.version = 11 : i64} {
  func.func @_ppg_kernel(%arg0: i32, %arg1: memref<256x11xf32, #tpu.memory_space<vmem>>, %arg2: memref<11x40xbf16, #tpu.memory_space<vmem>>, %arg3: memref<1x40xf32, #tpu.memory_space<vmem>>, %arg4: memref<3x40x40xbf16, #tpu.memory_space<vmem>>, %arg5: memref<3x1x40xf32, #tpu.memory_space<vmem>>, %arg6: memref<40x3xbf16, #tpu.memory_space<vmem>>, %arg7: memref<1x3xf32, #tpu.memory_space<vmem>>, %arg8: memref<256x3xf32, #tpu.memory_space<vmem>>) attributes {dimension_semantics = [#tpu.dimension_semantics<parallel>], iteration_bounds = array<i64: 2>, scalar_prefetch = 0 : i64, scratch_operands = 0 : i64, tpu.core_type = #tpu.core_type<tc>, window_params = [{transform_indices = @transform_0, window_bounds = array<i64: 256, 11>}, {pipeline_mode = #tpu.pipeline_mode<synchronous>, transform_indices = @transform_1, window_bounds = array<i64: 11, 40>}, {pipeline_mode = #tpu.pipeline_mode<synchronous>, transform_indices = @transform_2, window_bounds = array<i64: 1, 40>}, {pipeline_mode = #tpu.pipeline_mode<synchronous>, transform_indices = @transform_3, window_bounds = array<i64: 3, 40, 40>}, {pipeline_mode = #tpu.pipeline_mode<synchronous>, transform_indices = @transform_4, window_bounds = array<i64: 3, 1, 40>}, {pipeline_mode = #tpu.pipeline_mode<synchronous>, transform_indices = @transform_5, window_bounds = array<i64: 40, 3>}, {pipeline_mode = #tpu.pipeline_mode<synchronous>, transform_indices = @transform_6, window_bounds = array<i64: 1, 3>}, {transform_indices = @transform_7, window_bounds = array<i64: 256, 3>}]} {
    %c0 = arith.constant 0 : index
    %c0_0 = arith.constant 0 : index
    %0 = vector.load %arg1[%c0, %c0_0] : memref<256x11xf32, #tpu.memory_space<vmem>>, vector<256x11xf32>
    %1 = vector.extract_strided_slice %0 {offsets = [0, 0], sizes = [256, 3], strides = [1, 1]} : vector<256x11xf32> to vector<256x3xf32>
    %2 = tpu.iota {dimensions = array<i32: 1>} : vector<256x40xi32>
    %c32_i32 = arith.constant 32 : i32
    %3 = vector.broadcast %c32_i32 : i32 to vector<256x40xi32>
    %4 = arith.cmpi slt, %2, %3 : vector<256x40xi32>
    %5 = arith.truncf %0 : vector<256x11xf32> to vector<256x11xbf16>
    %c0_1 = arith.constant 0 : index
    %c0_2 = arith.constant 0 : index
    %6 = vector.load %arg2[%c0_1, %c0_2] : memref<11x40xbf16, #tpu.memory_space<vmem>>, vector<11x40xbf16>
    %cst = arith.constant dense<0.000000e+00> : vector<256x40xf32>
    %7 = tpu.matmul %5, %6, %cst {dimension_numbers = #tpu.dot_dimension_numbers<[1], [0], [0], [1], [0, 0, 1, 1], [], []>} : vector<256x11xbf16>, vector<11x40xbf16>, vector<256x40xf32> -> vector<256x40xf32>
    %c0_3 = arith.constant 0 : index
    %c0_4 = arith.constant 0 : index
    %8 = vector.load %arg3[%c0_3, %c0_4] : memref<1x40xf32, #tpu.memory_space<vmem>>, vector<1x40xf32>
    %9 = vector.broadcast %8 : vector<1x40xf32> to vector<256x40xf32>
    %10 = arith.addf %7, %9 : vector<256x40xf32>
    %cst_5 = arith.constant 0.000000e+00 : f32
    %11 = vector.broadcast %cst_5 : f32 to vector<256x40xf32>
    %12 = arith.cmpf olt, %10, %11 : vector<256x40xf32>
    %13 = arith.andi %4, %12 : vector<256x40xi1>
    %cst_6 = arith.constant 0.00999999977 : f32
    %14 = vector.broadcast %cst_6 : f32 to vector<256x40xf32>
    %15 = arith.mulf %14, %10 : vector<256x40xf32>
    %16 = arith.select %13, %15, %10 : vector<256x40xi1>, vector<256x40xf32>
    %17 = arith.truncf %16 : vector<256x40xf32> to vector<256x40xbf16>
    %c0_7 = arith.constant 0 : index
    %c0_8 = arith.constant 0 : index
    %c0_9 = arith.constant 0 : index
    %18 = vector.load %arg4[%c0_7, %c0_8, %c0_9] : memref<3x40x40xbf16, #tpu.memory_space<vmem>>, vector<1x40x40xbf16>
    %19 = vector.shape_cast %18 : vector<1x40x40xbf16> to vector<40x40xbf16>
    %cst_10 = arith.constant dense<0.000000e+00> : vector<256x40xf32>
    %20 = tpu.matmul %17, %19, %cst_10 {dimension_numbers = #tpu.dot_dimension_numbers<[1], [0], [0], [1], [0, 0, 1, 1], [], []>} : vector<256x40xbf16>, vector<40x40xbf16>, vector<256x40xf32> -> vector<256x40xf32>
    %c0_11 = arith.constant 0 : index
    %c0_12 = arith.constant 0 : index
    %c0_13 = arith.constant 0 : index
    %21 = vector.load %arg5[%c0_11, %c0_12, %c0_13] : memref<3x1x40xf32, #tpu.memory_space<vmem>>, vector<1x1x40xf32>
    %22 = vector.shape_cast %21 : vector<1x1x40xf32> to vector<1x40xf32>
    %23 = vector.broadcast %22 : vector<1x40xf32> to vector<256x40xf32>
    %24 = arith.addf %20, %23 : vector<256x40xf32>
    %cst_14 = arith.constant 0.000000e+00 : f32
    %25 = vector.broadcast %cst_14 : f32 to vector<256x40xf32>
    %26 = arith.cmpf olt, %24, %25 : vector<256x40xf32>
    %27 = arith.andi %4, %26 : vector<256x40xi1>
    %cst_15 = arith.constant 0.00999999977 : f32
    %28 = vector.broadcast %cst_15 : f32 to vector<256x40xf32>
    %29 = arith.mulf %28, %24 : vector<256x40xf32>
    %30 = arith.select %27, %29, %24 : vector<256x40xi1>, vector<256x40xf32>
    %31 = arith.truncf %30 : vector<256x40xf32> to vector<256x40xbf16>
    %c1 = arith.constant 1 : index
    %c0_16 = arith.constant 0 : index
    %c0_17 = arith.constant 0 : index
    %32 = vector.load %arg4[%c1, %c0_16, %c0_17] : memref<3x40x40xbf16, #tpu.memory_space<vmem>>, vector<1x40x40xbf16>
    %33 = vector.shape_cast %32 : vector<1x40x40xbf16> to vector<40x40xbf16>
    %cst_18 = arith.constant dense<0.000000e+00> : vector<256x40xf32>
    %34 = tpu.matmul %31, %33, %cst_18 {dimension_numbers = #tpu.dot_dimension_numbers<[1], [0], [0], [1], [0, 0, 1, 1], [], []>} : vector<256x40xbf16>, vector<40x40xbf16>, vector<256x40xf32> -> vector<256x40xf32>
    %c1_19 = arith.constant 1 : index
    %c0_20 = arith.constant 0 : index
    %c0_21 = arith.constant 0 : index
    %35 = vector.load %arg5[%c1_19, %c0_20, %c0_21] : memref<3x1x40xf32, #tpu.memory_space<vmem>>, vector<1x1x40xf32>
    %36 = vector.shape_cast %35 : vector<1x1x40xf32> to vector<1x40xf32>
    %37 = vector.broadcast %36 : vector<1x40xf32> to vector<256x40xf32>
    %38 = arith.addf %34, %37 : vector<256x40xf32>
    %cst_22 = arith.constant 0.000000e+00 : f32
    %39 = vector.broadcast %cst_22 : f32 to vector<256x40xf32>
    %40 = arith.cmpf olt, %38, %39 : vector<256x40xf32>
    %41 = arith.andi %4, %40 : vector<256x40xi1>
    %cst_23 = arith.constant 0.00999999977 : f32
    %42 = vector.broadcast %cst_23 : f32 to vector<256x40xf32>
    %43 = arith.mulf %42, %38 : vector<256x40xf32>
    %44 = arith.select %41, %43, %38 : vector<256x40xi1>, vector<256x40xf32>
    %45 = arith.truncf %44 : vector<256x40xf32> to vector<256x40xbf16>
    %c2 = arith.constant 2 : index
    %c0_24 = arith.constant 0 : index
    %c0_25 = arith.constant 0 : index
    %46 = vector.load %arg4[%c2, %c0_24, %c0_25] : memref<3x40x40xbf16, #tpu.memory_space<vmem>>, vector<1x40x40xbf16>
    %47 = vector.shape_cast %46 : vector<1x40x40xbf16> to vector<40x40xbf16>
    %cst_26 = arith.constant dense<0.000000e+00> : vector<256x40xf32>
    %48 = tpu.matmul %45, %47, %cst_26 {dimension_numbers = #tpu.dot_dimension_numbers<[1], [0], [0], [1], [0, 0, 1, 1], [], []>} : vector<256x40xbf16>, vector<40x40xbf16>, vector<256x40xf32> -> vector<256x40xf32>
    %c2_27 = arith.constant 2 : index
    %c0_28 = arith.constant 0 : index
    %c0_29 = arith.constant 0 : index
    %49 = vector.load %arg5[%c2_27, %c0_28, %c0_29] : memref<3x1x40xf32, #tpu.memory_space<vmem>>, vector<1x1x40xf32>
    %50 = vector.shape_cast %49 : vector<1x1x40xf32> to vector<1x40xf32>
    %51 = vector.broadcast %50 : vector<1x40xf32> to vector<256x40xf32>
    %52 = arith.addf %48, %51 : vector<256x40xf32>
    %cst_30 = arith.constant 0.000000e+00 : f32
    %53 = vector.broadcast %cst_30 : f32 to vector<256x40xf32>
    %54 = arith.cmpf olt, %52, %53 : vector<256x40xf32>
    %55 = arith.andi %4, %54 : vector<256x40xi1>
    %cst_31 = arith.constant 0.00999999977 : f32
    %56 = vector.broadcast %cst_31 : f32 to vector<256x40xf32>
    %57 = arith.mulf %56, %52 : vector<256x40xf32>
    %58 = arith.select %55, %57, %52 : vector<256x40xi1>, vector<256x40xf32>
    %59 = arith.truncf %58 : vector<256x40xf32> to vector<256x40xbf16>
    %c0_32 = arith.constant 0 : index
    %c0_33 = arith.constant 0 : index
    %60 = vector.load %arg6[%c0_32, %c0_33] : memref<40x3xbf16, #tpu.memory_space<vmem>>, vector<40x3xbf16>
    %cst_34 = arith.constant dense<0.000000e+00> : vector<256x3xf32>
    %61 = tpu.matmul %59, %60, %cst_34 {dimension_numbers = #tpu.dot_dimension_numbers<[1], [0], [0], [1], [0, 0, 1, 1], [], []>} : vector<256x40xbf16>, vector<40x3xbf16>, vector<256x3xf32> -> vector<256x3xf32>
    %c0_35 = arith.constant 0 : index
    %c0_36 = arith.constant 0 : index
    %62 = vector.load %arg7[%c0_35, %c0_36] : memref<1x3xf32, #tpu.memory_space<vmem>>, vector<1x3xf32>
    %63 = vector.broadcast %62 : vector<1x3xf32> to vector<256x3xf32>
    %64 = arith.addf %61, %63 : vector<256x3xf32>
    %cst_37 = arith.constant 1.000000e+00 : f32
    %65 = vector.broadcast %cst_37 : f32 to vector<256x3xf32>
    %66 = arith.cmpf ogt, %1, %65 : vector<256x3xf32>
    %67 = arith.addf %64, %1 : vector<256x3xf32>
    %68 = arith.select %66, %1, %67 : vector<256x3xi1>, vector<256x3xf32>
    %c0_38 = arith.constant 0 : index
    %c0_39 = arith.constant 0 : index
    %69 = vector.load %arg8[%c0_38, %c0_39] : memref<256x3xf32, #tpu.memory_space<vmem>>, vector<256x3xf32>
    tpu.vector_store %arg8[%c0_38, %c0_39], %68 {strides = array<i32>} : memref<256x3xf32, #tpu.memory_space<vmem>>, vector<256x3xf32>,
    return
  }
  func.func @transform_0(%arg0: i32) -> (i32, i32) {
    %c0_i32 = arith.constant 0 : i32
    %c0_i32_0 = arith.constant 0 : i32
    return %arg0, %c0_i32 : i32, i32
  }
  func.func @transform_1(%arg0: i32) -> (i32, i32) {
    %c0_i32 = arith.constant 0 : i32
    %c0_i32_0 = arith.constant 0 : i32
    %c0_i32_1 = arith.constant 0 : i32
    return %c0_i32, %c0_i32_0 : i32, i32
  }
  func.func @transform_2(%arg0: i32) -> (i32, i32) {
    %c0_i32 = arith.constant 0 : i32
    %c0_i32_0 = arith.constant 0 : i32
    %c0_i32_1 = arith.constant 0 : i32
    return %c0_i32, %c0_i32_0 : i32, i32
  }
  func.func @transform_3(%arg0: i32) -> (i32, i32, i32) {
    %c0_i32 = arith.constant 0 : i32
    %c0_i32_0 = arith.constant 0 : i32
    %c0_i32_1 = arith.constant 0 : i32
    %c0_i32_2 = arith.constant 0 : i32
    return %c0_i32, %c0_i32_0, %c0_i32_1 : i32, i32, i32
  }
  func.func @transform_4(%arg0: i32) -> (i32, i32, i32) {
    %c0_i32 = arith.constant 0 : i32
    %c0_i32_0 = arith.constant 0 : i32
    %c0_i32_1 = arith.constant 0 : i32
    %c0_i32_2 = arith.constant 0 : i32
    return %c0_i32, %c0_i32_0, %c0_i32_1 : i32, i32, i32
  }
  func.func @transform_5(%arg0: i32) -> (i32, i32) {
    %c0_i32 = arith.constant 0 : i32
    %c0_i32_0 = arith.constant 0 : i32
    %c0_i32_1 = arith.constant 0 : i32
    return %c0_i32, %c0_i32_0 : i32, i32
  }
  func.func @transform_6(%arg0: i32) -> (i32, i32) {
    %c0_i32 = arith.constant 0 : i32
    %c0_i32_0 = arith.constant 0 : i32
    %c0_i32_1 = arith.constant 0 : i32
    return %c0_i32, %c0_i32_0 : i32, i32
  }
  func.func @transform_7(%arg0: i32) -> (i32, i32) {
    %c0_i32 = arith.constant 0 : i32
    %c0_i32_0 = arith.constant 0 : i32
    return %arg0, %c0_i32 : i32, i32
  }
}

</mosaic_0001>

<llo_original>
// kernel: tpu_custom_call.1
$region0: #{tpu_custom_call.1}
  #allocation0 [shape = 'u32[]', space=smem, size = 0x4, offset = 0x4, fixed_abs, tag = 'smem constant byte address 0x4 - core index']
  #allocation1 [shape = 'u32[72,128]{1,0:T(1,128)}', space=vmem, size = 0x9000, scoped, tag = 'internal scratch']
  %s0 = inlined_call_operand.vmem [shape: f32[512,11], index: 0, kind: input, shape index: {}]
  %s1 = inlined_call_operand.vmem [shape: bf16[11,40], index: 1, kind: input, shape index: {}]
  %s2 = inlined_call_operand.vmem [shape: f32[1,40], index: 2, kind: input, shape index: {}]
  %s3 = inlined_call_operand.vmem [shape: bf16[3,40,40], index: 3, kind: input, shape index: {}]
  %s4 = inlined_call_operand.vmem [shape: f32[3,1,40], index: 4, kind: input, shape index: {}]
  %s5 = inlined_call_operand.vmem [shape: bf16[40,3], index: 5, kind: input, shape index: {}]
  %s6 = inlined_call_operand.vmem [shape: f32[1,3], index: 6, kind: input, shape index: {}]
  %s7 = inlined_call_operand.vmem [shape: f32[512,3], index: 7, kind: output, shape index: {}]
  %s8 = sld [smem:[#allocation0]]
  $region61: #{tpu_custom_call.1} parent=0
    _
  %s10 = ssub.s32 1, %s8
  %s11 = scalar_select 0, %s10, %s8
  loop: start=0, step=1, limit=4
  $region2: #{tpu_custom_call.1} parent=0 // loop_pre_header
    _
  $region3: #{tpu_custom_call.1} parent=0 // loop_header
    %s13 = sphi 0, %s17
    %p14 = scmp.ge.s32.totalorder %s13, 4
    %s23 = sphi 0, %s25
    %s26 = sphi 0, %s23
    %s27 = sphi 0, %s26
    %s43 = sphi 0, %s27
    %s47 = sphi 0, %s47
    %s49 = sphi 0, %s47
    %s50 = sphi 0, %s49
    %s64 = sphi 0, %s50
    %s68 = sphi 0, %s68
    %s70 = sphi 0, %s68
    %s71 = sphi 0, %s70
    %s85 = sphi 0, %s71
    %s89 = sphi 0, %s89
    %s91 = sphi 0, %s89
    %s92 = sphi 0, %s91
    %s106 = sphi 0, %s92
    %s110 = sphi 0, %s110
    %s112 = sphi 0, %s110
    %s113 = sphi 0, %s112
    %s127 = sphi 0, %s113
    %s131 = sphi 0, %s131
    %s133 = sphi 0, %s131
    %s134 = sphi 0, %s133
    %s148 = sphi 0, %s134
    %s152 = sphi 0, %s152
    %s154 = sphi 0, %s152
    %s155 = sphi 0, %s154
    %s169 = sphi 0, %s155
    %s175 = sphi 0, %s177
    %s178 = sphi 0, %s175
    %s179 = sphi 0, %s178
    %s195 = sphi 0, %s179
  $region4: #{tpu_custom_call.1} parent=0 // loop_header_branch
    %16 = sbr.rel (%p14) target = $region8
  $region5: #{tpu_custom_call.1} parent=0 // loop_body
    %s18 = ssub.s32 %s13, 1
    %s19 = ssub.s32 %s13, 2
    %s20 = sadd.s32 %s13, 1
    %s21 = ssub.s32 %s13, %s20
    %p22 = scmp.eq.s32.totalorder %s21, 0
    %s24 = sadd.s32 %s23, 1
    %s25 = scalar_select %p22, %s23, %s24
    %p28 = pneg %p22
    %p29 = scmp.eq.s32.totalorder %s13, 1
    %p30 = por %p28, %p29
    %p31 = scmp.ne.s32.totalorder %s23, %s26
    %p32 = scmp.eq.s32.totalorder %s13, 0
    %p33 = por %p31, %p32
    %p34 = scmp.ne.s32.totalorder %s23, %s26
    %p35 = scmp.eq.s32.totalorder %s18, 1
    %p36 = por %p34, %p35
    %p37 = scmp.ne.s32.totalorder %s26, %s27
    %p38 = scmp.eq.s32.totalorder %s18, 0
    %p39 = por %p37, %p38
    %p40 = scmp.ne.s32.totalorder %s26, %s27
    %p41 = scmp.eq.s32.totalorder %s19, 1
    %p42 = por %p40, %p41
    %p44 = scmp.ne.s32.totalorder %s27, %s43
    %p45 = scmp.eq.s32.totalorder %s19, 0
    %p46 = por %p44, %p45
    %s48 = sadd.s32 %s47, 1
    %p51 = scmp.eq.s32.totalorder %s13, 1
    %p52 = scmp.ne.s32.totalorder %s47, %s49
    %p53 = scmp.eq.s32.totalorder %s13, 0
    %p54 = por %p52, %p53
    %p55 = scmp.ne.s32.totalorder %s47, %s49
    %p56 = scmp.eq.s32.totalorder %s18, 1
    %p57 = por %p55, %p56
    %p58 = scmp.ne.s32.totalorder %s49, %s50
    %p59 = scmp.eq.s32.totalorder %s18, 0
    %p60 = por %p58, %p59
    %p61 = scmp.ne.s32.totalorder %s49, %s50
    %p62 = scmp.eq.s32.totalorder %s19, 1
    %p63 = por %p61, %p62
    %p65 = scmp.ne.s32.totalorder %s50, %s64
    %p66 = scmp.eq.s32.totalorder %s19, 0
    %p67 = por %p65, %p66
    %s69 = sadd.s32 %s68, 1
    %p72 = scmp.eq.s32.totalorder %s13, 1
    %p73 = scmp.ne.s32.totalorder %s68, %s70
    %p74 = scmp.eq.s32.totalorder %s13, 0
    %p75 = por %p73, %p74
    %p76 = scmp.ne.s32.totalorder %s68, %s70
    %p77 = scmp.eq.s32.totalorder %s18, 1
    %p78 = por %p76, %p77
    %p79 = scmp.ne.s32.totalorder %s70, %s71
    %p80 = scmp.eq.s32.totalorder %s18, 0
    %p81 = por %p79, %p80
    %p82 = scmp.ne.s32.totalorder %s70, %s71
    %p83 = scmp.eq.s32.totalorder %s19, 1
    %p84 = por %p82, %p83
    %p86 = scmp.ne.s32.totalorder %s71, %s85
    %p87 = scmp.eq.s32.totalorder %s19, 0
    %p88 = por %p86, %p87
    %s90 = sadd.s32 %s89, 1
    %p93 = scmp.eq.s32.totalorder %s13, 1
    %p94 = scmp.ne.s32.totalorder %s89, %s91
    %p95 = scmp.eq.s32.totalorder %s13, 0
    %p96 = por %p94, %p95
    %p97 = scmp.ne.s32.totalorder %s89, %s91
    %p98 = scmp.eq.s32.totalorder %s18, 1
    %p99 = por %p97, %p98
    %p100 = scmp.ne.s32.totalorder %s91, %s92
    %p101 = scmp.eq.s32.totalorder %s18, 0
    %p102 = por %p100, %p101
    %p103 = scmp.ne.s32.totalorder %s91, %s92
    %p104 = scmp.eq.s32.totalorder %s19, 1
    %p105 = por %p103, %p104
    %p107 = scmp.ne.s32.totalorder %s92, %s106
    %p108 = scmp.eq.s32.totalorder %s19, 0
    %p109 = por %p107, %p108
    %s111 = sadd.s32 %s110, 1
    %p114 = scmp.eq.s32.totalorder %s13, 1
    %p115 = scmp.ne.s32.totalorder %s110, %s112
    %p116 = scmp.eq.s32.totalorder %s13, 0
    %p117 = por %p115, %p116
    %p118 = scmp.ne.s32.totalorder %s110, %s112
    %p119 = scmp.eq.s32.totalorder %s18, 1
    %p120 = por %p118, %p119
    %p121 = scmp.ne.s32.totalorder %s112, %s113
    %p122 = scmp.eq.s32.totalorder %s18, 0
    %p123 = por %p121, %p122
    %p124 = scmp.ne.s32.totalorder %s112, %s113
    %p125 = scmp.eq.s32.totalorder %s19, 1
    %p126 = por %p124, %p125
    %p128 = scmp.ne.s32.totalorder %s113, %s127
    %p129 = scmp.eq.s32.totalorder %s19, 0
    %p130 = por %p128, %p129
    %s132 = sadd.s32 %s131, 1
    %p135 = scmp.eq.s32.totalorder %s13, 1
    %p136 = scmp.ne.s32.totalorder %s131, %s133
    %p137 = scmp.eq.s32.totalorder %s13, 0
    %p138 = por %p136, %p137
    %p139 = scmp.ne.s32.totalorder %s131, %s133
    %p140 = scmp.eq.s32.totalorder %s18, 1
    %p141 = por %p139, %p140
    %p142 = scmp.ne.s32.totalorder %s133, %s134
    %p143 = scmp.eq.s32.totalorder %s18, 0
    %p144 = por %p142, %p143
    %p145 = scmp.ne.s32.totalorder %s133, %s134
    %p146 = scmp.eq.s32.totalorder %s19, 1
    %p147 = por %p145, %p146
    %p149 = scmp.ne.s32.totalorder %s134, %s148
    %p150 = scmp.eq.s32.totalorder %s19, 0
    %p151 = por %p149, %p150
    %s153 = sadd.s32 %s152, 1
    %p156 = scmp.eq.s32.totalorder %s13, 1
    %p157 = scmp.ne.s32.totalorder %s152, %s154
    %p158 = scmp.eq.s32.totalorder %s13, 0
    %p159 = por %p157, %p158
    %p160 = scmp.ne.s32.totalorder %s152, %s154
    %p161 = scmp.eq.s32.totalorder %s18, 1
    %p162 = por %p160, %p161
    %p163 = scmp.ne.s32.totalorder %s154, %s155
    %p164 = scmp.eq.s32.totalorder %s18, 0
    %p165 = por %p163, %p164
    %p166 = scmp.ne.s32.totalorder %s154, %s155
    %p167 = scmp.eq.s32.totalorder %s19, 1
    %p168 = por %p166, %p167
    %p170 = scmp.ne.s32.totalorder %s155, %s169
    %p171 = scmp.eq.s32.totalorder %s19, 0
    %p172 = por %p170, %p171
    %s173 = ssub.s32 %s13, %s20
    %p174 = scmp.eq.s32.totalorder %s173, 0
    %s176 = sadd.s32 %s175, 1
    %s177 = scalar_select %p174, %s175, %s176
    %p180 = pneg %p174
    %p181 = scmp.eq.s32.totalorder %s13, 1
    %p182 = por %p180, %p181
    %p183 = scmp.ne.s32.totalorder %s175, %s178
    %p184 = scmp.eq.s32.totalorder %s13, 0
    %p185 = por %p183, %p184
    %p186 = scmp.ne.s32.totalorder %s175, %s178
    %p187 = scmp.eq.s32.totalorder %s18, 1
    %p188 = por %p186, %p187
    %p189 = scmp.ne.s32.totalorder %s178, %s179
    %p190 = scmp.eq.s32.totalorder %s18, 0
    %p191 = por %p189, %p190
    %p192 = scmp.ne.s32.totalorder %s178, %s179
    %p193 = scmp.eq.s32.totalorder %s19, 1
    %p194 = por %p192, %p193
    %p196 = scmp.ne.s32.totalorder %s179, %s195
    %p197 = scmp.eq.s32.totalorder %s19, 0
    %p198 = por %p196, %p197
    %p199 = scmp.le.s32.totalorder 1, %s13
    %p200 = scmp.lt.s32.totalorder %s13, 3
    %p201 = pnand %p199, %p200
    %p202 = pneg %p201
    // Predicated region
    $region9: #{tpu_custom_call.1} parent=5 // pred_check
      _
    $region10: #{tpu_custom_call.1} parent=5 // pred_check_branch
      %204 = sbr.rel (%p201) target = $region12
    $region11: #{tpu_custom_call.1} parent=5 // pred_region
      %s205 = ssub.s32 %s13, 1
      // Predicated region
      $region13: #{tpu_custom_call.1} parent=11 // pred_check
        %p206 = pneg %p60
      $region14: #{tpu_custom_call.1} parent=11 // pred_check_branch
        %208 = sbr.rel (%p206) target = $region16
      $region15: #{tpu_custom_call.1} parent=11 // pred_region
        _
      $region16: #{tpu_custom_call.1} parent=11 // pred_fallthru
        _
      // Predicated region
      $region17: #{tpu_custom_call.1} parent=11 // pred_check
        %p209 = pneg %p81
      $region18: #{tpu_custom_call.1} parent=11 // pred_check_branch
        %211 = sbr.rel (%p209) target = $region20
      $region19: #{tpu_custom_call.1} parent=11 // pred_region
        _
      $region20: #{tpu_custom_call.1} parent=11 // pred_fallthru
        _
      // Predicated region
      $region21: #{tpu_custom_call.1} parent=11 // pred_check
        %p212 = pneg %p102
      $region22: #{tpu_custom_call.1} parent=11 // pred_check_branch
        %214 = sbr.rel (%p212) target = $region24
      $region23: #{tpu_custom_call.1} parent=11 // pred_region
        _
      $region24: #{tpu_custom_call.1} parent=11 // pred_fallthru
        _
      // Predicated region
      $region25: #{tpu_custom_call.1} parent=11 // pred_check
        %p215 = pneg %p123
      $region26: #{tpu_custom_call.1} parent=11 // pred_check_branch
        %217 = sbr.rel (%p215) target = $region28
      $region27: #{tpu_custom_call.1} parent=11 // pred_region
        _
      $region28: #{tpu_custom_call.1} parent=11 // pred_fallthru
        _
      // Predicated region
      $region29: #{tpu_custom_call.1} parent=11 // pred_check
        %p218 = pneg %p144
      $region30: #{tpu_custom_call.1} parent=11 // pred_check_branch
        %220 = sbr.rel (%p218) target = $region32
      $region31: #{tpu_custom_call.1} parent=11 // pred_region
        _
      $region32: #{tpu_custom_call.1} parent=11 // pred_fallthru
        _
      // Predicated region
      $region33: #{tpu_custom_call.1} parent=11 // pred_check
        %p221 = pneg %p165
      $region34: #{tpu_custom_call.1} parent=11 // pred_check_branch
        %223 = sbr.rel (%p221) target = $region36
      $region35: #{tpu_custom_call.1} parent=11 // pred_region
        _
      $region36: #{tpu_custom_call.1} parent=11 // pred_fallthru
        _
    $region12: #{tpu_custom_call.1} parent=5 // pred_fallthru
      _
    %p224 = scmp.lt.s32.totalorder %s13, 2
    // Predicated region
    $region37: #{tpu_custom_call.1} parent=5 // pred_check
      %p225 = pneg %p224
    $region38: #{tpu_custom_call.1} parent=5 // pred_check_branch
      %227 = sbr.rel (%p225) target = $region40
    $region39: #{tpu_custom_call.1} parent=5 // pred_region
      // Predicated region
      $region41: #{tpu_custom_call.1} parent=39 // pred_check
        %p228 = pneg %p33
      $region42: #{tpu_custom_call.1} parent=39 // pred_check_branch
        %230 = sbr.rel (%p228) target = $region44
      $region43: #{tpu_custom_call.1} parent=39 // pred_region
        %s231 = smul.u32 32, %s13
        %p232 = scmp.lt.s32.totalorder %s231, 63
        %s233 = scalar_select %p232, %s231, 63
        %s234 = smul.addr %s233, 8
        %s235 = scalar_lea.vmem %s0, %s234
        %s236 = smul.u32 32, %s13
      $region44: #{tpu_custom_call.1} parent=39 // pred_fallthru
        _
    $region40: #{tpu_custom_call.1} parent=5 // pred_fallthru
      _
    %p237 = scmp.le.s32.totalorder 1, %s13
    %p238 = scmp.lt.s32.totalorder %s13, 3
    %p239 = pnand %p237, %p238
    %p240 = pneg %p239
    // Predicated region
    $region45: #{tpu_custom_call.1} parent=5 // pred_check
      _
    $region46: #{tpu_custom_call.1} parent=5 // pred_check_branch
      %242 = sbr.rel (%p239) target = $region48
    $region47: #{tpu_custom_call.1} parent=5 // pred_region
      %s243 = ssub.s32 %s13, 1
      %s244 = smul.u32 32, %s18
      %p245 = scmp.lt.s32.totalorder %s244, 63
      %s246 = scalar_select %p245, %s244, 63
      %s247 = smul.addr %s246, 8
      %s248 = scalar_lea.vmem %s0, %s247
      %p249 = pneg %p39
      %p250 = pneg %p36
      %p251 = pneg %p60
      %p252 = pneg %p57
      %p253 = pneg %p81
      %p254 = pneg %p78
      %p255 = pneg %p102
      %p256 = pneg %p99
      %p257 = pneg %p123
      %p258 = pneg %p120
      %p259 = pneg %p144
      %p260 = pneg %p141
      %p261 = pneg %p165
      %p262 = pneg %p162
      %p263 = pneg %p191
      %p264 = pneg %p188
      %s265 = smul.u32 32, %s18
      %p266 = scmp.lt.s32.totalorder %s265, 63
      %s267 = scalar_select %p266, %s265, 63
      %s268 = smul.addr %s267, 8
      %s269 = scalar_lea.vmem %s7, %s268
      %s270 = smul.u32 32, %s18
      %p271 = scmp.lt.s32.totalorder %s270, 63
      %s272 = scalar_select %p271, %s270, 63
      %s273 = smul.addr %s272, 8
      %s274 = scalar_lea.vmem %s0, %s273
      %s275 = smul.u32 32, %s18
      %s276 = smul.u32 32, %s18
      %p277 = scmp.lt.s32.totalorder %s276, 63
      %s278 = scalar_select %p277, %s276, 63
      %s279 = smul.addr %s278, 8
      %s280 = scalar_lea.vmem %s7, %s279
      %s281 = smul.u32 32, %s18
      %v283 = vld [vmem:[%s274] sm:$0xff]
      %v284 = vld [vmem:[%s274 + $0x8] sm:$0xff]
      %v285 = vld [vmem:[%s274 + $0x10] sm:$0xff]
      %v286 = vld [vmem:[%s274 + $0x18] sm:$0xff]
      %v287 = vld [vmem:[%s274 + $0x20] sm:$0xff]
      %v288 = vld [vmem:[%s274 + $0x28] sm:$0xff]
      %v289 = vld [vmem:[%s274 + $0x30] sm:$0xff]
      %v290 = vld [vmem:[%s274 + $0x38] sm:$0xff]
      %v291 = vld [vmem:[%s274 + $0x40] sm:$0xff]
      %v292 = vld [vmem:[%s274 + $0x48] sm:$0xff]
      %v293 = vld [vmem:[%s274 + $0x50] sm:$0xff]
      %v294 = vld [vmem:[%s274 + $0x58] sm:$0xff]
      %v295 = vld [vmem:[%s274 + $0x60] sm:$0xff]
      %v296 = vld [vmem:[%s274 + $0x68] sm:$0xff]
      %v297 = vld [vmem:[%s274 + $0x70] sm:$0xff]
      %v298 = vld [vmem:[%s274 + $0x78] sm:$0xff]
      %v299 = vld [vmem:[%s274 + $0x80] sm:$0xff]
      %v300 = vld [vmem:[%s274 + $0x88] sm:$0xff]
      %v301 = vld [vmem:[%s274 + $0x90] sm:$0xff]
      %v302 = vld [vmem:[%s274 + $0x98] sm:$0xff]
      %v303 = vld [vmem:[%s274 + $0xa0] sm:$0xff]
      %v304 = vld [vmem:[%s274 + $0xa8] sm:$0xff]
      %v305 = vld [vmem:[%s274 + $0xb0] sm:$0xff]
      %v306 = vld [vmem:[%s274 + $0xb8] sm:$0xff]
      %v307 = vld [vmem:[%s274 + $0xc0] sm:$0xff]
      %v308 = vld [vmem:[%s274 + $0xc8] sm:$0xff]
      %v309 = vld [vmem:[%s274 + $0xd0] sm:$0xff]
      %v310 = vld [vmem:[%s274 + $0xd8] sm:$0xff]
      %v311 = vld [vmem:[%s274 + $0xe0] sm:$0xff]
      %v312 = vld [vmem:[%s274 + $0xe8] sm:$0xff]
      %v313 = vld [vmem:[%s274 + $0xf0] sm:$0xff]
      %v314 = vld [vmem:[%s274 + $0xf8] sm:$0xff]
      %v315 = vlaneseq
      %v316 = vand.u32 %v315, 127
      %vm317 = vcmp.lt.s32.totalorder %v316, 32
      %v318 = vpack.c.bf16 %v284, %v283
      %v319 = vpack.c.bf16 %v286, %v285
      %v320 = vpack.c.bf16 %v288, %v287
      %v321 = vpack.c.bf16 %v290, %v289
      %v322 = vpack.c.bf16 %v292, %v291
      %v323 = vpack.c.bf16 %v294, %v293
      %v324 = vpack.c.bf16 %v296, %v295
      %v325 = vpack.c.bf16 %v298, %v297
      %v326 = vpack.c.bf16 %v300, %v299
      %v327 = vpack.c.bf16 %v302, %v301
      %v328 = vpack.c.bf16 %v304, %v303
      %v329 = vpack.c.bf16 %v306, %v305
      %v330 = vpack.c.bf16 %v308, %v307
      %v331 = vpack.c.bf16 %v310, %v309
      %v332 = vpack.c.bf16 %v312, %v311
      %v333 = vpack.c.bf16 %v314, %v313
      %v334 = vld [vmem:[%s1] sm:$0xf]
      %v335 = vld [vmem:[%s1 + $0x4] sm:$0x3]
      %v336 = vld [vmem:[%s2] sm:$0x1]
      %v338 = vperm.slane %v336, 0
      %v342 = vunpack.c.l.b16 %v334
      %v343 = vunpack.c.l.b16 %v335
      %v344 = vpack.c.b16 %v343, %v342
      %vm345 = vcmask 89088
      %v347 = vsel %vm345, %v318, 0
      %v350 = vsel %vm345, %v319, 0
      %v353 = vsel %vm345, %v320, 0
      %v356 = vsel %vm345, %v321, 0
      %v359 = vsel %vm345, %v322, 0
      %v362 = vsel %vm345, %v323, 0
      %v365 = vsel %vm345, %v324, 0
      %v368 = vsel %vm345, %v325, 0
      %v371 = vsel %vm345, %v326, 0
      %v374 = vsel %vm345, %v327, 0
      %v377 = vsel %vm345, %v328, 0
      %v380 = vsel %vm345, %v329, 0
      %v383 = vsel %vm345, %v330, 0
      %v386 = vsel %vm345, %v331, 0
      %v389 = vsel %vm345, %v332, 0
      %v392 = vsel %vm345, %v333, 0
      %vm394 = vcmask 1044480
      %vm395 = vcmask 1045504
      %v396 = vsel %vm394, 4294967295, 65535
      %v397 = vsel %vm395, %v396, 0
      %v399 = vand.u32 %v344, %v397
      %401 = vmatpush.bf16.msra.mxu0 0
      %402 = vmatpush.bf16.msra.mxu0 0
      %403 = vmatpush.bf16.msra.mxu0 0
      %404 = vmatpush.bf16.msra.mxu0 0
      %405 = vmatpush.bf16.msra.mxu0 0
      %406 = vmatpush.bf16.msra.mxu0 0
      %407 = vmatpush.bf16.msra.mxu0 0
      %408 = vmatpush.bf16.msra.mxu0 %v399
      %409 = vmatmul.bf16.gmra.mxu0 %v347
      %v410 = vpop.f32.mrf.mxu0
      %v411 = vadd.f32 %v338, %v410
      %v412 = vpop.f32.mrf.mxu0
      %v413 = vadd.f32 %v338, %v412
      %414 = vmatmul.bf16.gmra.mxu0 %v350
      %v415 = vpop.f32.mrf.mxu0
      %v416 = vadd.f32 %v338, %v415
      %v417 = vpop.f32.mrf.mxu0
      %v418 = vadd.f32 %v338, %v417
      %419 = vmatmul.bf16.gmra.mxu0 %v353
      %v420 = vpop.f32.mrf.mxu0
      %v421 = vadd.f32 %v338, %v420
      %v422 = vpop.f32.mrf.mxu0
      %v423 = vadd.f32 %v338, %v422
      %424 = vmatmul.bf16.gmra.mxu0 %v356
      %v425 = vpop.f32.mrf.mxu0
      %v426 = vadd.f32 %v338, %v425
      %v427 = vpop.f32.mrf.mxu0
      %v428 = vadd.f32 %v338, %v427
      %429 = vmatmul.bf16.gmra.mxu0 %v359
      %v430 = vpop.f32.mrf.mxu0
      %v431 = vadd.f32 %v338, %v430
      %v432 = vpop.f32.mrf.mxu0
      %v433 = vadd.f32 %v338, %v432
      %434 = vmatmul.bf16.gmra.mxu0 %v362
      %v435 = vpop.f32.mrf.mxu0
      %v436 = vadd.f32 %v338, %v435
      %v437 = vpop.f32.mrf.mxu0
      %v438 = vadd.f32 %v338, %v437
      %439 = vmatmul.bf16.gmra.mxu0 %v365
      %v440 = vpop.f32.mrf.mxu0
      %v441 = vadd.f32 %v338, %v440
      %v442 = vpop.f32.mrf.mxu0
      %v443 = vadd.f32 %v338, %v442
      %444 = vmatmul.bf16.gmra.mxu0 %v368
      %v445 = vpop.f32.mrf.mxu0
      %v446 = vadd.f32 %v338, %v445
      %v447 = vpop.f32.mrf.mxu0
      %v448 = vadd.f32 %v338, %v447
      %449 = vmatmul.bf16.gmra.mxu0 %v371
      %v450 = vpop.f32.mrf.mxu0
      %v451 = vadd.f32 %v338, %v450
      %v452 = vpop.f32.mrf.mxu0
      %v453 = vadd.f32 %v338, %v452
      %454 = vmatmul.bf16.gmra.mxu0 %v374
      %v455 = vpop.f32.mrf.mxu0
      %v456 = vadd.f32 %v338, %v455
      %v457 = vpop.f32.mrf.mxu0
      %v458 = vadd.f32 %v338, %v457
      %459 = vmatmul.bf16.gmra.mxu0 %v377
      %v460 = vpop.f32.mrf.mxu0
      %v461 = vadd.f32 %v338, %v460
      %v462 = vpop.f32.mrf.mxu0
      %v463 = vadd.f32 %v338, %v462
      %464 = vmatmul.bf16.gmra.mxu0 %v380
      %v465 = vpop.f32.mrf.mxu0
      %v466 = vadd.f32 %v338, %v465
      %v467 = vpop.f32.mrf.mxu0
      %v468 = vadd.f32 %v338, %v467
      %469 = vmatmul.bf16.gmra.mxu0 %v383
      %v470 = vpop.f32.mrf.mxu0
      %v471 = vadd.f32 %v338, %v470
      %v472 = vpop.f32.mrf.mxu0
      %v473 = vadd.f32 %v338, %v472
      %474 = vmatmul.bf16.gmra.mxu0 %v386
      %v475 = vpop.f32.mrf.mxu0
      %v476 = vadd.f32 %v338, %v475
      %v477 = vpop.f32.mrf.mxu0
      %v478 = vadd.f32 %v338, %v477
      %479 = vmatmul.bf16.gmra.mxu0 %v389
      %v480 = vpop.f32.mrf.mxu0
      %v481 = vadd.f32 %v338, %v480
      %v482 = vpop.f32.mrf.mxu0
      %v483 = vadd.f32 %v338, %v482
      %484 = vmatmul.bf16.gmra.mxu0 %v392
      %v485 = vpop.f32.mrf.mxu0
      %v486 = vadd.f32 %v338, %v485
      %v487 = vpop.f32.mrf.mxu0
      %v488 = vadd.f32 %v338, %v487
      %489 = vdwg.mxu0
      %vm490 = vcmp.lt.f32.partialorder %v411, 0.0
      %vm491 = vcmp.lt.f32.partialorder %v413, 0.0
      %vm492 = vcmp.lt.f32.partialorder %v416, 0.0
      %vm493 = vcmp.lt.f32.partialorder %v418, 0.0
      %vm494 = vcmp.lt.f32.partialorder %v421, 0.0
      %vm495 = vcmp.lt.f32.partialorder %v423, 0.0
      %vm496 = vcmp.lt.f32.partialorder %v426, 0.0
      %vm497 = vcmp.lt.f32.partialorder %v428, 0.0
      %vm498 = vcmp.lt.f32.partialorder %v431, 0.0
      %vm499 = vcmp.lt.f32.partialorder %v433, 0.0
      %vm500 = vcmp.lt.f32.partialorder %v436, 0.0
      %vm501 = vcmp.lt.f32.partialorder %v438, 0.0
      %vm502 = vcmp.lt.f32.partialorder %v441, 0.0
      %vm503 = vcmp.lt.f32.partialorder %v443, 0.0
      %vm504 = vcmp.lt.f32.partialorder %v446, 0.0
      %vm505 = vcmp.lt.f32.partialorder %v448, 0.0
      %vm506 = vcmp.lt.f32.partialorder %v451, 0.0
      %vm507 = vcmp.lt.f32.partialorder %v453, 0.0
      %vm508 = vcmp.lt.f32.partialorder %v456, 0.0
      %vm509 = vcmp.lt.f32.partialorder %v458, 0.0
      %vm510 = vcmp.lt.f32.partialorder %v461, 0.0
      %vm511 = vcmp.lt.f32.partialorder %v463, 0.0
      %vm512 = vcmp.lt.f32.partialorder %v466, 0.0
      %vm513 = vcmp.lt.f32.partialorder %v468, 0.0
      %vm514 = vcmp.lt.f32.partialorder %v471, 0.0
      %vm515 = vcmp.lt.f32.partialorder %v473, 0.0
      %vm516 = vcmp.lt.f32.partialorder %v476, 0.0
      %vm517 = vcmp.lt.f32.partialorder %v478, 0.0
      %vm518 = vcmp.lt.f32.partialorder %v481, 0.0
      %vm519 = vcmp.lt.f32.partialorder %v483, 0.0
      %vm520 = vcmp.lt.f32.partialorder %v486, 0.0
      %vm521 = vcmp.lt.f32.partialorder %v488, 0.0
      %vm522 = vmand %vm317, %vm490
      %vm523 = vmand %vm317, %vm491
      %vm524 = vmand %vm317, %vm492
      %vm525 = vmand %vm317, %vm493
      %vm526 = vmand %vm317, %vm494
      %vm527 = vmand %vm317, %vm495
      %vm528 = vmand %vm317, %vm496
      %vm529 = vmand %vm317, %vm497
      %vm530 = vmand %vm317, %vm498
      %vm531 = vmand %vm317, %vm499
      %vm532 = vmand %vm317, %vm500
      %vm533 = vmand %vm317, %vm501
      %vm534 = vmand %vm317, %vm502
      %vm535 = vmand %vm317, %vm503
      %vm536 = vmand %vm317, %vm504
      %vm537 = vmand %vm317, %vm505
      %vm538 = vmand %vm317, %vm506
      %vm539 = vmand %vm317, %vm507
      %vm540 = vmand %vm317, %vm508
      %vm541 = vmand %vm317, %vm509
      %vm542 = vmand %vm317, %vm510
      %vm543 = vmand %vm317, %vm511
      %vm544 = vmand %vm317, %vm512
      %vm545 = vmand %vm317, %vm513
      %vm546 = vmand %vm317, %vm514
      %vm547 = vmand %vm317, %vm515
      %vm548 = vmand %vm317, %vm516
      %vm549 = vmand %vm317, %vm517
      %vm550 = vmand %vm317, %vm518
      %vm551 = vmand %vm317, %vm519
      %vm552 = vmand %vm317, %vm520
      %vm553 = vmand %vm317, %vm521
      %v554 = vmul.f32 %v411, 0.01
      %v555 = vmul.f32 %v413, 0.01
      %v556 = vmul.f32 %v416, 0.01
      %v557 = vmul.f32 %v418, 0.01
      %v558 = vmul.f32 %v421, 0.01
      %v559 = vmul.f32 %v423, 0.01
      %v560 = vmul.f32 %v426, 0.01
      %v561 = vmul.f32 %v428, 0.01
      %v562 = vmul.f32 %v431, 0.01
      %v563 = vmul.f32 %v433, 0.01
      %v564 = vmul.f32 %v436, 0.01
      %v565 = vmul.f32 %v438, 0.01
      %v566 = vmul.f32 %v441, 0.01
      %v567 = vmul.f32 %v443, 0.01
      %v568 = vmul.f32 %v446, 0.01
      %v569 = vmul.f32 %v448, 0.01
      %v570 = vmul.f32 %v451, 0.01
      %v571 = vmul.f32 %v453, 0.01
      %v572 = vmul.f32 %v456, 0.01
      %v573 = vmul.f32 %v458, 0.01
      %v574 = vmul.f32 %v461, 0.01
      %v575 = vmul.f32 %v463, 0.01
      %v576 = vmul.f32 %v466, 0.01
      %v577 = vmul.f32 %v468, 0.01
      %v578 = vmul.f32 %v471, 0.01
      %v579 = vmul.f32 %v473, 0.01
      %v580 = vmul.f32 %v476, 0.01
      %v581 = vmul.f32 %v478, 0.01
      %v582 = vmul.f32 %v481, 0.01
      %v583 = vmul.f32 %v483, 0.01
      %v584 = vmul.f32 %v486, 0.01
      %v585 = vmul.f32 %v488, 0.01
      %v586 = vsel %vm522, %v554, %v411
      %v587 = vsel %vm523, %v555, %v413
      %v588 = vsel %vm524, %v556, %v416
      %v589 = vsel %vm525, %v557, %v418
      %v590 = vsel %vm526, %v558, %v421
      %v591 = vsel %vm527, %v559, %v423
      %v592 = vsel %vm528, %v560, %v426
      %v593 = vsel %vm529, %v561, %v428
      %v594 = vsel %vm530, %v562, %v431
      %v595 = vsel %vm531, %v563, %v433
      %v596 = vsel %vm532, %v564, %v436
      %v597 = vsel %vm533, %v565, %v438
      %v598 = vsel %vm534, %v566, %v441
      %v599 = vsel %vm535, %v567, %v443
      %v600 = vsel %vm536, %v568, %v446
      %v601 = vsel %vm537, %v569, %v448
      %v602 = vsel %vm538, %v570, %v451
      %v603 = vsel %vm539, %v571, %v453
      %v604 = vsel %vm540, %v572, %v456
      %v605 = vsel %vm541, %v573, %v458
      %v606 = vsel %vm542, %v574, %v461
      %v607 = vsel %vm543, %v575, %v463
      %v608 = vsel %vm544, %v576, %v466
      %v609 = vsel %vm545, %v577, %v468
      %v610 = vsel %vm546, %v578, %v471
      %v611 = vsel %vm547, %v579, %v473
      %v612 = vsel %vm548, %v580, %v476
      %v613 = vsel %vm549, %v581, %v478
      %v614 = vsel %vm550, %v582, %v481
      %v615 = vsel %vm551, %v583, %v483
      %v616 = vsel %vm552, %v584, %v486
      %v617 = vsel %vm553, %v585, %v488
      %v618 = vpack.c.bf16 %v587, %v586
      %v619 = vpack.c.bf16 %v589, %v588
      %v620 = vpack.c.bf16 %v591, %v590
      %v621 = vpack.c.bf16 %v593, %v592
      %v622 = vpack.c.bf16 %v595, %v594
      %v623 = vpack.c.bf16 %v597, %v596
      %v624 = vpack.c.bf16 %v599, %v598
      %v625 = vpack.c.bf16 %v601, %v600
      %v626 = vpack.c.bf16 %v603, %v602
      %v627 = vpack.c.bf16 %v605, %v604
      %v628 = vpack.c.bf16 %v607, %v606
      %v629 = vpack.c.bf16 %v609, %v608
      %v630 = vpack.c.bf16 %v611, %v610
      %v631 = vpack.c.bf16 %v613, %v612
      %v632 = vpack.c.bf16 %v615, %v614
      %v633 = vpack.c.bf16 %v617, %v616
      %v634 = vld [vmem:[%s3] sm:$0xf]
      %v635 = vld [vmem:[%s3 + $0x4] sm:$0xf]
      %v636 = vld [vmem:[%s3 + $0x8] sm:$0xf]
      %v637 = vld [vmem:[%s3 + $0xc] sm:$0xf]
      %v638 = vld [vmem:[%s3 + $0x10] sm:$0xf]
      %v639 = vld [vmem:[%s4] sm:$0x1]
      %v641 = vperm.slane %v639, 0
      %v648 = vunpack.c.l.b16 %v634
      %v649 = vunpack.c.l.b16 %v635
      %v650 = vunpack.c.l.b16 %v636
      %v651 = vunpack.c.l.b16 %v637
      %v652 = vunpack.c.l.b16 %v638
      %v653 = vpack.c.b16 %v649, %v648
      %v654 = vpack.c.b16 %v651, %v650
      %v655 = vpack.c.b16 %v652, %v652
      %vm658 = vcmask 326656
      %v660 = vsel %vm658, %v618, 0
      %v663 = vsel %vm658, %v619, 0
      %v666 = vsel %vm658, %v620, 0
      %v669 = vsel %vm658, %v621, 0
      %v672 = vsel %vm658, %v622, 0
      %v675 = vsel %vm658, %v623, 0
      %v678 = vsel %vm658, %v624, 0
      %v681 = vsel %vm658, %v625, 0
      %v684 = vsel %vm658, %v626, 0
      %v687 = vsel %vm658, %v627, 0
      %v690 = vsel %vm658, %v628, 0
      %v693 = vsel %vm658, %v629, 0
      %v696 = vsel %vm658, %v630, 0
      %v699 = vsel %vm658, %v631, 0
      %v702 = vsel %vm658, %v632, 0
      %v705 = vsel %vm658, %v633, 0
      %vm707 = vcmask 1043456
      %v709 = vsel %vm707, %v655, 0
      %711 = vmatpush.bf16.msra.mxu0 0
      %712 = vmatpush.bf16.msra.mxu0 0
      %713 = vmatpush.bf16.msra.mxu0 0
      %714 = vmatpush.bf16.msra.mxu0 0
      %715 = vmatpush.bf16.msra.mxu0 0
      %716 = vmatpush.bf16.msra.mxu0 %v709
      %717 = vmatpush.bf16.msra.mxu0 %v654
      %718 = vmatpush.bf16.msra.mxu0 %v653
      %719 = vmatmul.bf16.gmra.mxu0 %v660
      %v720 = vpop.f32.mrf.mxu0
      %v721 = vadd.f32 %v641, %v720
      %v722 = vpop.f32.mrf.mxu0
      %v723 = vadd.f32 %v641, %v722
      %724 = vmatmul.bf16.gmra.mxu0 %v663
      %v725 = vpop.f32.mrf.mxu0
      %v726 = vadd.f32 %v641, %v725
      %v727 = vpop.f32.mrf.mxu0
      %v728 = vadd.f32 %v641, %v727
      %729 = vmatmul.bf16.gmra.mxu0 %v666
      %v730 = vpop.f32.mrf.mxu0
      %v731 = vadd.f32 %v641, %v730
      %v732 = vpop.f32.mrf.mxu0
      %v733 = vadd.f32 %v641, %v732
      %734 = vmatmul.bf16.gmra.mxu0 %v669
      %v735 = vpop.f32.mrf.mxu0
      %v736 = vadd.f32 %v641, %v735
      %v737 = vpop.f32.mrf.mxu0
      %v738 = vadd.f32 %v641, %v737
      %739 = vmatmul.bf16.gmra.mxu0 %v672
      %v740 = vpop.f32.mrf.mxu0
      %v741 = vadd.f32 %v641, %v740
      %v742 = vpop.f32.mrf.mxu0
      %v743 = vadd.f32 %v641, %v742
      %744 = vmatmul.bf16.gmra.mxu0 %v675
      %v745 = vpop.f32.mrf.mxu0
      %v746 = vadd.f32 %v641, %v745
      %v747 = vpop.f32.mrf.mxu0
      %v748 = vadd.f32 %v641, %v747
      %749 = vmatmul.bf16.gmra.mxu0 %v678
      %v750 = vpop.f32.mrf.mxu0
      %v751 = vadd.f32 %v641, %v750
      %v752 = vpop.f32.mrf.mxu0
      %v753 = vadd.f32 %v641, %v752
      %754 = vmatmul.bf16.gmra.mxu0 %v681
      %v755 = vpop.f32.mrf.mxu0
      %v756 = vadd.f32 %v641, %v755
      %v757 = vpop.f32.mrf.mxu0
      %v758 = vadd.f32 %v641, %v757
      %759 = vmatmul.bf16.gmra.mxu0 %v684
      %v760 = vpop.f32.mrf.mxu0
      %v761 = vadd.f32 %v641, %v760
      %v762 = vpop.f32.mrf.mxu0
      %v763 = vadd.f32 %v641, %v762
      %764 = vmatmul.bf16.gmra.mxu0 %v687
      %v765 = vpop.f32.mrf.mxu0
      %v766 = vadd.f32 %v641, %v765
      %v767 = vpop.f32.mrf.mxu0
      %v768 = vadd.f32 %v641, %v767
      %769 = vmatmul.bf16.gmra.mxu0 %v690
      %v770 = vpop.f32.mrf.mxu0
      %v771 = vadd.f32 %v641, %v770
      %v772 = vpop.f32.mrf.mxu0
      %v773 = vadd.f32 %v641, %v772
      %774 = vmatmul.bf16.gmra.mxu0 %v693
      %v775 = vpop.f32.mrf.mxu0
      %v776 = vadd.f32 %v641, %v775
      %v777 = vpop.f32.mrf.mxu0
      %v778 = vadd.f32 %v641, %v777
      %779 = vmatmul.bf16.gmra.mxu0 %v696
      %v780 = vpop.f32.mrf.mxu0
      %v781 = vadd.f32 %v641, %v780
      %v782 = vpop.f32.mrf.mxu0
      %v783 = vadd.f32 %v641, %v782
      %784 = vmatmul.bf16.gmra.mxu0 %v699
      %v785 = vpop.f32.mrf.mxu0
      %v786 = vadd.f32 %v641, %v785
      %v787 = vpop.f32.mrf.mxu0
      %v788 = vadd.f32 %v641, %v787
      %789 = vmatmul.bf16.gmra.mxu0 %v702
      %v790 = vpop.f32.mrf.mxu0
      %v791 = vadd.f32 %v641, %v790
      %v792 = vpop.f32.mrf.mxu0
      %v793 = vadd.f32 %v641, %v792
      %794 = vmatmul.bf16.gmra.mxu0 %v705
      %v795 = vpop.f32.mrf.mxu0
      %v796 = vadd.f32 %v641, %v795
      %v797 = vpop.f32.mrf.mxu0
      %v798 = vadd.f32 %v641, %v797
      %799 = vdwg.mxu0
      %vm800 = vcmp.lt.f32.partialorder %v721, 0.0
      %vm801 = vcmp.lt.f32.partialorder %v723, 0.0
      %vm802 = vcmp.lt.f32.partialorder %v726, 0.0
      %vm803 = vcmp.lt.f32.partialorder %v728, 0.0
      %vm804 = vcmp.lt.f32.partialorder %v731, 0.0
      %vm805 = vcmp.lt.f32.partialorder %v733, 0.0
      %vm806 = vcmp.lt.f32.partialorder %v736, 0.0
      %vm807 = vcmp.lt.f32.partialorder %v738, 0.0
      %vm808 = vcmp.lt.f32.partialorder %v741, 0.0
      %vm809 = vcmp.lt.f32.partialorder %v743, 0.0
      %vm810 = vcmp.lt.f32.partialorder %v746, 0.0
      %vm811 = vcmp.lt.f32.partialorder %v748, 0.0
      %vm812 = vcmp.lt.f32.partialorder %v751, 0.0
      %vm813 = vcmp.lt.f32.partialorder %v753, 0.0
      %vm814 = vcmp.lt.f32.partialorder %v756, 0.0
      %vm815 = vcmp.lt.f32.partialorder %v758, 0.0
      %vm816 = vcmp.lt.f32.partialorder %v761, 0.0
      %vm817 = vcmp.lt.f32.partialorder %v763, 0.0
      %vm818 = vcmp.lt.f32.partialorder %v766, 0.0
      %vm819 = vcmp.lt.f32.partialorder %v768, 0.0
      %vm820 = vcmp.lt.f32.partialorder %v771, 0.0
      %vm821 = vcmp.lt.f32.partialorder %v773, 0.0
      %vm822 = vcmp.lt.f32.partialorder %v776, 0.0
      %vm823 = vcmp.lt.f32.partialorder %v778, 0.0
      %vm824 = vcmp.lt.f32.partialorder %v781, 0.0
      %vm825 = vcmp.lt.f32.partialorder %v783, 0.0
      %vm826 = vcmp.lt.f32.partialorder %v786, 0.0
      %vm827 = vcmp.lt.f32.partialorder %v788, 0.0
      %vm828 = vcmp.lt.f32.partialorder %v791, 0.0
      %vm829 = vcmp.lt.f32.partialorder %v793, 0.0
      %vm830 = vcmp.lt.f32.partialorder %v796, 0.0
      %vm831 = vcmp.lt.f32.partialorder %v798, 0.0
      %vm832 = vmand %vm317, %vm800
      %vm833 = vmand %vm317, %vm801
      %vm834 = vmand %vm317, %vm802
      %vm835 = vmand %vm317, %vm803
      %vm836 = vmand %vm317, %vm804
      %vm837 = vmand %vm317, %vm805
      %vm838 = vmand %vm317, %vm806
      %vm839 = vmand %vm317, %vm807
      %vm840 = vmand %vm317, %vm808
      %vm841 = vmand %vm317, %vm809
      %vm842 = vmand %vm317, %vm810
      %vm843 = vmand %vm317, %vm811
      %vm844 = vmand %vm317, %vm812
      %vm845 = vmand %vm317, %vm813
      %vm846 = vmand %vm317, %vm814
      %vm847 = vmand %vm317, %vm815
      %vm848 = vmand %vm317, %vm816
      %vm849 = vmand %vm317, %vm817
      %vm850 = vmand %vm317, %vm818
      %vm851 = vmand %vm317, %vm819
      %vm852 = vmand %vm317, %vm820
      %vm853 = vmand %vm317, %vm821
      %vm854 = vmand %vm317, %vm822
      %vm855 = vmand %vm317, %vm823
      %vm856 = vmand %vm317, %vm824
      %vm857 = vmand %vm317, %vm825
      %vm858 = vmand %vm317, %vm826
      %vm859 = vmand %vm317, %vm827
      %vm860 = vmand %vm317, %vm828
      %vm861 = vmand %vm317, %vm829
      %vm862 = vmand %vm317, %vm830
      %vm863 = vmand %vm317, %vm831
      %v864 = vmul.f32 %v721, 0.01
      %v865 = vmul.f32 %v723, 0.01
      %v866 = vmul.f32 %v726, 0.01
      %v867 = vmul.f32 %v728, 0.01
      %v868 = vmul.f32 %v731, 0.01
      %v869 = vmul.f32 %v733, 0.01
      %v870 = vmul.f32 %v736, 0.01
      %v871 = vmul.f32 %v738, 0.01
      %v872 = vmul.f32 %v741, 0.01
      %v873 = vmul.f32 %v743, 0.01
      %v874 = vmul.f32 %v746, 0.01
      %v875 = vmul.f32 %v748, 0.01
      %v876 = vmul.f32 %v751, 0.01
      %v877 = vmul.f32 %v753, 0.01
      %v878 = vmul.f32 %v756, 0.01
      %v879 = vmul.f32 %v758, 0.01
      %v880 = vmul.f32 %v761, 0.01
      %v881 = vmul.f32 %v763, 0.01
      %v882 = vmul.f32 %v766, 0.01
      %v883 = vmul.f32 %v768, 0.01
      %v884 = vmul.f32 %v771, 0.01
      %v885 = vmul.f32 %v773, 0.01
      %v886 = vmul.f32 %v776, 0.01
      %v887 = vmul.f32 %v778, 0.01
      %v888 = vmul.f32 %v781, 0.01
      %v889 = vmul.f32 %v783, 0.01
      %v890 = vmul.f32 %v786, 0.01
      %v891 = vmul.f32 %v788, 0.01
      %v892 = vmul.f32 %v791, 0.01
      %v893 = vmul.f32 %v793, 0.01
      %v894 = vmul.f32 %v796, 0.01
      %v895 = vmul.f32 %v798, 0.01
      %v896 = vsel %vm832, %v864, %v721
      %v897 = vsel %vm833, %v865, %v723
      %v898 = vsel %vm834, %v866, %v726
      %v899 = vsel %vm835, %v867, %v728
      %v900 = vsel %vm836, %v868, %v731
      %v901 = vsel %vm837, %v869, %v733
      %v902 = vsel %vm838, %v870, %v736
      %v903 = vsel %vm839, %v871, %v738
      %v904 = vsel %vm840, %v872, %v741
      %v905 = vsel %vm841, %v873, %v743
      %v906 = vsel %vm842, %v874, %v746
      %v907 = vsel %vm843, %v875, %v748
      %v908 = vsel %vm844, %v876, %v751
      %v909 = vsel %vm845, %v877, %v753
      %v910 = vsel %vm846, %v878, %v756
      %v911 = vsel %vm847, %v879, %v758
      %v912 = vsel %vm848, %v880, %v761
      %v913 = vsel %vm849, %v881, %v763
      %v914 = vsel %vm850, %v882, %v766
      %v915 = vsel %vm851, %v883, %v768
      %v916 = vsel %vm852, %v884, %v771
      %v917 = vsel %vm853, %v885, %v773
      %v918 = vsel %vm854, %v886, %v776
      %v919 = vsel %vm855, %v887, %v778
      %v920 = vsel %vm856, %v888, %v781
      %v921 = vsel %vm857, %v889, %v783
      %v922 = vsel %vm858, %v890, %v786
      %v923 = vsel %vm859, %v891, %v788
      %v924 = vsel %vm860, %v892, %v791
      %v925 = vsel %vm861, %v893, %v793
      %v926 = vsel %vm862, %v894, %v796
      %v927 = vsel %vm863, %v895, %v798
      %v928 = vpack.c.bf16 %v897, %v896
      %v929 = vpack.c.bf16 %v899, %v898
      %v930 = vpack.c.bf16 %v901, %v900
      %v931 = vpack.c.bf16 %v903, %v902
      %v932 = vpack.c.bf16 %v905, %v904
      %v933 = vpack.c.bf16 %v907, %v906
      %v934 = vpack.c.bf16 %v909, %v908
      %v935 = vpack.c.bf16 %v911, %v910
      %v936 = vpack.c.bf16 %v913, %v912
      %v937 = vpack.c.bf16 %v915, %v914
      %v938 = vpack.c.bf16 %v917, %v916
      %v939 = vpack.c.bf16 %v919, %v918
      %v940 = vpack.c.bf16 %v921, %v920
      %v941 = vpack.c.bf16 %v923, %v922
      %v942 = vpack.c.bf16 %v925, %v924
      %v943 = vpack.c.bf16 %v927, %v926
      %s944 = scalar_lea.vmem %s3, 20
      %v945 = vld [vmem:[%s944] sm:$0xf]
      %v946 = vld [vmem:[%s944 + $0x4] sm:$0xf]
      %v947 = vld [vmem:[%s944 + $0x8] sm:$0xf]
      %v948 = vld [vmem:[%s944 + $0xc] sm:$0xf]
      %v949 = vld [vmem:[%s944 + $0x10] sm:$0xf]
      %s950 = scalar_lea.vmem %s4, 1
      %v951 = vld [vmem:[%s950] sm:$0x1]
      %v953 = vperm.slane %v951, 0
      %v960 = vunpack.c.l.b16 %v945
      %v961 = vunpack.c.l.b16 %v946
      %v962 = vunpack.c.l.b16 %v947
      %v963 = vunpack.c.l.b16 %v948
      %v964 = vunpack.c.l.b16 %v949
      %v965 = vpack.c.b16 %v961, %v960
      %v966 = vpack.c.b16 %v963, %v962
      %v967 = vpack.c.b16 %v964, %v964
      %v971 = vsel %vm658, %v928, 0
      %v974 = vsel %vm658, %v929, 0
      %v977 = vsel %vm658, %v930, 0
      %v980 = vsel %vm658, %v931, 0
      %v983 = vsel %vm658, %v932, 0
      %v986 = vsel %vm658, %v933, 0
      %v989 = vsel %vm658, %v934, 0
      %v992 = vsel %vm658, %v935, 0
      %v995 = vsel %vm658, %v936, 0
      %v998 = vsel %vm658, %v937, 0
      %v1001 = vsel %vm658, %v938, 0
      %v1004 = vsel %vm658, %v939, 0
      %v1007 = vsel %vm658, %v940, 0
      %v1010 = vsel %vm658, %v941, 0
      %v1013 = vsel %vm658, %v942, 0
      %v1016 = vsel %vm658, %v943, 0
      %v1019 = vsel %vm707, %v967, 0
      %1021 = vmatpush.bf16.msra.mxu0 0
      %1022 = vmatpush.bf16.msra.mxu0 0
      %1023 = vmatpush.bf16.msra.mxu0 0
      %1024 = vmatpush.bf16.msra.mxu0 0
      %1025 = vmatpush.bf16.msra.mxu0 0
      %1026 = vmatpush.bf16.msra.mxu0 %v1019
      %1027 = vmatpush.bf16.msra.mxu0 %v966
      %1028 = vmatpush.bf16.msra.mxu0 %v965
      %1029 = vmatmul.bf16.gmra.mxu0 %v971
      %v1030 = vpop.f32.mrf.mxu0
      %v1031 = vadd.f32 %v953, %v1030
      %v1032 = vpop.f32.mrf.mxu0
      %v1033 = vadd.f32 %v953, %v1032
      %1034 = vmatmul.bf16.gmra.mxu0 %v974
      %v1035 = vpop.f32.mrf.mxu0
      %v1036 = vadd.f32 %v953, %v1035
      %v1037 = vpop.f32.mrf.mxu0
      %v1038 = vadd.f32 %v953, %v1037
      %1039 = vmatmul.bf16.gmra.mxu0 %v977
      %v1040 = vpop.f32.mrf.mxu0
      %v1041 = vadd.f32 %v953, %v1040
      %v1042 = vpop.f32.mrf.mxu0
      %v1043 = vadd.f32 %v953, %v1042
      %1044 = vmatmul.bf16.gmra.mxu0 %v980
      %v1045 = vpop.f32.mrf.mxu0
      %v1046 = vadd.f32 %v953, %v1045
      %v1047 = vpop.f32.mrf.mxu0
      %v1048 = vadd.f32 %v953, %v1047
      %1049 = vmatmul.bf16.gmra.mxu0 %v983
      %v1050 = vpop.f32.mrf.mxu0
      %v1051 = vadd.f32 %v953, %v1050
      %v1052 = vpop.f32.mrf.mxu0
      %v1053 = vadd.f32 %v953, %v1052
      %1054 = vmatmul.bf16.gmra.mxu0 %v986
      %v1055 = vpop.f32.mrf.mxu0
      %v1056 = vadd.f32 %v953, %v1055
      %v1057 = vpop.f32.mrf.mxu0
      %v1058 = vadd.f32 %v953, %v1057
      %1059 = vmatmul.bf16.gmra.mxu0 %v989
      %v1060 = vpop.f32.mrf.mxu0
      %v1061 = vadd.f32 %v953, %v1060
      %v1062 = vpop.f32.mrf.mxu0
      %v1063 = vadd.f32 %v953, %v1062
      %1064 = vmatmul.bf16.gmra.mxu0 %v992
      %v1065 = vpop.f32.mrf.mxu0
      %v1066 = vadd.f32 %v953, %v1065
      %v1067 = vpop.f32.mrf.mxu0
      %v1068 = vadd.f32 %v953, %v1067
      %1069 = vmatmul.bf16.gmra.mxu0 %v995
      %v1070 = vpop.f32.mrf.mxu0
      %v1071 = vadd.f32 %v953, %v1070
      %v1072 = vpop.f32.mrf.mxu0
      %v1073 = vadd.f32 %v953, %v1072
      %1074 = vmatmul.bf16.gmra.mxu0 %v998
      %v1075 = vpop.f32.mrf.mxu0
      %v1076 = vadd.f32 %v953, %v1075
      %v1077 = vpop.f32.mrf.mxu0
      %v1078 = vadd.f32 %v953, %v1077
      %1079 = vmatmul.bf16.gmra.mxu0 %v1001
      %v1080 = vpop.f32.mrf.mxu0
      %v1081 = vadd.f32 %v953, %v1080
      %v1082 = vpop.f32.mrf.mxu0
      %v1083 = vadd.f32 %v953, %v1082
      %1084 = vmatmul.bf16.gmra.mxu0 %v1004
      %v1085 = vpop.f32.mrf.mxu0
      %v1086 = vadd.f32 %v953, %v1085
      %v1087 = vpop.f32.mrf.mxu0
      %v1088 = vadd.f32 %v953, %v1087
      %1089 = vmatmul.bf16.gmra.mxu0 %v1007
      %v1090 = vpop.f32.mrf.mxu0
      %v1091 = vadd.f32 %v953, %v1090
      %v1092 = vpop.f32.mrf.mxu0
      %v1093 = vadd.f32 %v953, %v1092
      %1094 = vmatmul.bf16.gmra.mxu0 %v1010
      %v1095 = vpop.f32.mrf.mxu0
      %v1096 = vadd.f32 %v953, %v1095
      %v1097 = vpop.f32.mrf.mxu0
      %v1098 = vadd.f32 %v953, %v1097
      %1099 = vmatmul.bf16.gmra.mxu0 %v1013
      %v1100 = vpop.f32.mrf.mxu0
      %v1101 = vadd.f32 %v953, %v1100
      %v1102 = vpop.f32.mrf.mxu0
      %v1103 = vadd.f32 %v953, %v1102
      %1104 = vmatmul.bf16.gmra.mxu0 %v1016
      %v1105 = vpop.f32.mrf.mxu0
      %v1106 = vadd.f32 %v953, %v1105
      %v1107 = vpop.f32.mrf.mxu0
      %v1108 = vadd.f32 %v953, %v1107
      %1109 = vdwg.mxu0
      %vm1110 = vcmp.lt.f32.partialorder %v1031, 0.0
      %vm1111 = vcmp.lt.f32.partialorder %v1033, 0.0
      %vm1112 = vcmp.lt.f32.partialorder %v1036, 0.0
      %vm1113 = vcmp.lt.f32.partialorder %v1038, 0.0
      %vm1114 = vcmp.lt.f32.partialorder %v1041, 0.0
      %vm1115 = vcmp.lt.f32.partialorder %v1043, 0.0
      %vm1116 = vcmp.lt.f32.partialorder %v1046, 0.0
      %vm1117 = vcmp.lt.f32.partialorder %v1048, 0.0
      %vm1118 = vcmp.lt.f32.partialorder %v1051, 0.0
      %vm1119 = vcmp.lt.f32.partialorder %v1053, 0.0
      %vm1120 = vcmp.lt.f32.partialorder %v1056, 0.0
      %vm1121 = vcmp.lt.f32.partialorder %v1058, 0.0
      %vm1122 = vcmp.lt.f32.partialorder %v1061, 0.0
      %vm1123 = vcmp.lt.f32.partialorder %v1063, 0.0
      %vm1124 = vcmp.lt.f32.partialorder %v1066, 0.0
      %vm1125 = vcmp.lt.f32.partialorder %v1068, 0.0
      %vm1126 = vcmp.lt.f32.partialorder %v1071, 0.0
      %vm1127 = vcmp.lt.f32.partialorder %v1073, 0.0
      %vm1128 = vcmp.lt.f32.partialorder %v1076, 0.0
      %vm1129 = vcmp.lt.f32.partialorder %v1078, 0.0
      %vm1130 = vcmp.lt.f32.partialorder %v1081, 0.0
      %vm1131 = vcmp.lt.f32.partialorder %v1083, 0.0
      %vm1132 = vcmp.lt.f32.partialorder %v1086, 0.0
      %vm1133 = vcmp.lt.f32.partialorder %v1088, 0.0
      %vm1134 = vcmp.lt.f32.partialorder %v1091, 0.0
      %vm1135 = vcmp.lt.f32.partialorder %v1093, 0.0
      %vm1136 = vcmp.lt.f32.partialorder %v1096, 0.0
      %vm1137 = vcmp.lt.f32.partialorder %v1098, 0.0
      %vm1138 = vcmp.lt.f32.partialorder %v1101, 0.0
      %vm1139 = vcmp.lt.f32.partialorder %v1103, 0.0
      %vm1140 = vcmp.lt.f32.partialorder %v1106, 0.0
      %vm1141 = vcmp.lt.f32.partialorder %v1108, 0.0
      %vm1142 = vmand %vm317, %vm1110
      %vm1143 = vmand %vm317, %vm1111
      %vm1144 = vmand %vm317, %vm1112
      %vm1145 = vmand %vm317, %vm1113
      %vm1146 = vmand %vm317, %vm1114
      %vm1147 = vmand %vm317, %vm1115
      %vm1148 = vmand %vm317, %vm1116
      %vm1149 = vmand %vm317, %vm1117
      %vm1150 = vmand %vm317, %vm1118
      %vm1151 = vmand %vm317, %vm1119
      %vm1152 = vmand %vm317, %vm1120
      %vm1153 = vmand %vm317, %vm1121
      %vm1154 = vmand %vm317, %vm1122
      %vm1155 = vmand %vm317, %vm1123
      %vm1156 = vmand %vm317, %vm1124
      %vm1157 = vmand %vm317, %vm1125
      %vm1158 = vmand %vm317, %vm1126
      %vm1159 = vmand %vm317, %vm1127
      %vm1160 = vmand %vm317, %vm1128
      %vm1161 = vmand %vm317, %vm1129
      %vm1162 = vmand %vm317, %vm1130
      %vm1163 = vmand %vm317, %vm1131
      %vm1164 = vmand %vm317, %vm1132
      %vm1165 = vmand %vm317, %vm1133
      %vm1166 = vmand %vm317, %vm1134
      %vm1167 = vmand %vm317, %vm1135
      %vm1168 = vmand %vm317, %vm1136
      %vm1169 = vmand %vm317, %vm1137
      %vm1170 = vmand %vm317, %vm1138
      %vm1171 = vmand %vm317, %vm1139
      %vm1172 = vmand %vm317, %vm1140
      %vm1173 = vmand %vm317, %vm1141
      %v1174 = vmul.f32 %v1031, 0.01
      %v1175 = vmul.f32 %v1033, 0.01
      %v1176 = vmul.f32 %v1036, 0.01
      %v1177 = vmul.f32 %v1038, 0.01
      %v1178 = vmul.f32 %v1041, 0.01
      %v1179 = vmul.f32 %v1043, 0.01
      %v1180 = vmul.f32 %v1046, 0.01
      %v1181 = vmul.f32 %v1048, 0.01
      %v1182 = vmul.f32 %v1051, 0.01
      %v1183 = vmul.f32 %v1053, 0.01
      %v1184 = vmul.f32 %v1056, 0.01
      %v1185 = vmul.f32 %v1058, 0.01
      %v1186 = vmul.f32 %v1061, 0.01
      %v1187 = vmul.f32 %v1063, 0.01
      %v1188 = vmul.f32 %v1066, 0.01
      %v1189 = vmul.f32 %v1068, 0.01
      %v1190 = vmul.f32 %v1071, 0.01
      %v1191 = vmul.f32 %v1073, 0.01
      %v1192 = vmul.f32 %v1076, 0.01
      %v1193 = vmul.f32 %v1078, 0.01
      %v1194 = vmul.f32 %v1081, 0.01
      %v1195 = vmul.f32 %v1083, 0.01
      %v1196 = vmul.f32 %v1086, 0.01
      %v1197 = vmul.f32 %v1088, 0.01
      %v1198 = vmul.f32 %v1091, 0.01
      %v1199 = vmul.f32 %v1093, 0.01
      %v1200 = vmul.f32 %v1096, 0.01
      %v1201 = vmul.f32 %v1098, 0.01
      %v1202 = vmul.f32 %v1101, 0.01
      %v1203 = vmul.f32 %v1103, 0.01
      %v1204 = vmul.f32 %v1106, 0.01
      %v1205 = vmul.f32 %v1108, 0.01
      %v1206 = vsel %vm1142, %v1174, %v1031
      %v1207 = vsel %vm1143, %v1175, %v1033
      %v1208 = vsel %vm1144, %v1176, %v1036
      %v1209 = vsel %vm1145, %v1177, %v1038
      %v1210 = vsel %vm1146, %v1178, %v1041
      %v1211 = vsel %vm1147, %v1179, %v1043
      %v1212 = vsel %vm1148, %v1180, %v1046
      %v1213 = vsel %vm1149, %v1181, %v1048
      %v1214 = vsel %vm1150, %v1182, %v1051
      %v1215 = vsel %vm1151, %v1183, %v1053
      %v1216 = vsel %vm1152, %v1184, %v1056
      %v1217 = vsel %vm1153, %v1185, %v1058
      %v1218 = vsel %vm1154, %v1186, %v1061
      %v1219 = vsel %vm1155, %v1187, %v1063
      %v1220 = vsel %vm1156, %v1188, %v1066
      %v1221 = vsel %vm1157, %v1189, %v1068
      %v1222 = vsel %vm1158, %v1190, %v1071
      %v1223 = vsel %vm1159, %v1191, %v1073
      %v1224 = vsel %vm1160, %v1192, %v1076
      %v1225 = vsel %vm1161, %v1193, %v1078
      %v1226 = vsel %vm1162, %v1194, %v1081
      %v1227 = vsel %vm1163, %v1195, %v1083
      %v1228 = vsel %vm1164, %v1196, %v1086
      %v1229 = vsel %vm1165, %v1197, %v1088
      %v1230 = vsel %vm1166, %v1198, %v1091
      %v1231 = vsel %vm1167, %v1199, %v1093
      %v1232 = vsel %vm1168, %v1200, %v1096
      %v1233 = vsel %vm1169, %v1201, %v1098
      %v1234 = vsel %vm1170, %v1202, %v1101
      %v1235 = vsel %vm1171, %v1203, %v1103
      %v1236 = vsel %vm1172, %v1204, %v1106
      %v1237 = vsel %vm1173, %v1205, %v1108
      %v1238 = vpack.c.bf16 %v1207, %v1206
      %v1239 = vpack.c.bf16 %v1209, %v1208
      %v1240 = vpack.c.bf16 %v1211, %v1210
      %v1241 = vpack.c.bf16 %v1213, %v1212
      %v1242 = vpack.c.bf16 %v1215, %v1214
      %v1243 = vpack.c.bf16 %v1217, %v1216
      %v1244 = vpack.c.bf16 %v1219, %v1218
      %v1245 = vpack.c.bf16 %v1221, %v1220
      %v1246 = vpack.c.bf16 %v1223, %v1222
      %v1247 = vpack.c.bf16 %v1225, %v1224
      %v1248 = vpack.c.bf16 %v1227, %v1226
      %v1249 = vpack.c.bf16 %v1229, %v1228
      %v1250 = vpack.c.bf16 %v1231, %v1230
      %v1251 = vpack.c.bf16 %v1233, %v1232
      %v1252 = vpack.c.bf16 %v1235, %v1234
      %v1253 = vpack.c.bf16 %v1237, %v1236
      %s1254 = scalar_lea.vmem %s3, 40
      %v1255 = vld [vmem:[%s1254] sm:$0xf]
      %v1256 = vld [vmem:[%s1254 + $0x4] sm:$0xf]
      %v1257 = vld [vmem:[%s1254 + $0x8] sm:$0xf]
      %v1258 = vld [vmem:[%s1254 + $0xc] sm:$0xf]
      %v1259 = vld [vmem:[%s1254 + $0x10] sm:$0xf]
      %s1260 = scalar_lea.vmem %s4, 2
      %v1261 = vld [vmem:[%s1260] sm:$0x1]
      %v1263 = vperm.slane %v1261, 0
      %v1270 = vunpack.c.l.b16 %v1255
      %v1271 = vunpack.c.l.b16 %v1256
      %v1272 = vunpack.c.l.b16 %v1257
      %v1273 = vunpack.c.l.b16 %v1258
      %v1274 = vunpack.c.l.b16 %v1259
      %v1275 = vpack.c.b16 %v1271, %v1270
      %v1276 = vpack.c.b16 %v1273, %v1272
      %v1277 = vpack.c.b16 %v1274, %v1274
      %v1281 = vsel %vm658, %v1238, 0
      %v1284 = vsel %vm658, %v1239, 0
      %v1287 = vsel %vm658, %v1240, 0
      %v1290 = vsel %vm658, %v1241, 0
      %v1293 = vsel %vm658, %v1242, 0
      %v1296 = vsel %vm658, %v1243, 0
      %v1299 = vsel %vm658, %v1244, 0
      %v1302 = vsel %vm658, %v1245, 0
      %v1305 = vsel %vm658, %v1246, 0
      %v1308 = vsel %vm658, %v1247, 0
      %v1311 = vsel %vm658, %v1248, 0
      %v1314 = vsel %vm658, %v1249, 0
      %v1317 = vsel %vm658, %v1250, 0
      %v1320 = vsel %vm658, %v1251, 0
      %v1323 = vsel %vm658, %v1252, 0
      %v1326 = vsel %vm658, %v1253, 0
      %v1329 = vsel %vm707, %v1277, 0
      %1331 = vmatpush.bf16.msra.mxu0 0
      %1332 = vmatpush.bf16.msra.mxu0 0
      %1333 = vmatpush.bf16.msra.mxu0 0
      %1334 = vmatpush.bf16.msra.mxu0 0
      %1335 = vmatpush.bf16.msra.mxu0 0
      %1336 = vmatpush.bf16.msra.mxu0 %v1329
      %1337 = vmatpush.bf16.msra.mxu0 %v1276
      %1338 = vmatpush.bf16.msra.mxu0 %v1275
      %1339 = vmatmul.bf16.gmra.mxu0 %v1281
      %v1340 = vpop.f32.mrf.mxu0
      %v1341 = vadd.f32 %v1263, %v1340
      %v1342 = vpop.f32.mrf.mxu0
      %v1343 = vadd.f32 %v1263, %v1342
      %1344 = vmatmul.bf16.gmra.mxu0 %v1284
      %v1345 = vpop.f32.mrf.mxu0
      %v1346 = vadd.f32 %v1263, %v1345
      %v1347 = vpop.f32.mrf.mxu0
      %v1348 = vadd.f32 %v1263, %v1347
      %1349 = vmatmul.bf16.gmra.mxu0 %v1287
      %v1350 = vpop.f32.mrf.mxu0
      %v1351 = vadd.f32 %v1263, %v1350
      %v1352 = vpop.f32.mrf.mxu0
      %v1353 = vadd.f32 %v1263, %v1352
      %1354 = vmatmul.bf16.gmra.mxu0 %v1290
      %v1355 = vpop.f32.mrf.mxu0
      %v1356 = vadd.f32 %v1263, %v1355
      %v1357 = vpop.f32.mrf.mxu0
      %v1358 = vadd.f32 %v1263, %v1357
      %1359 = vmatmul.bf16.gmra.mxu0 %v1293
      %v1360 = vpop.f32.mrf.mxu0
      %v1361 = vadd.f32 %v1263, %v1360
      %v1362 = vpop.f32.mrf.mxu0
      %v1363 = vadd.f32 %v1263, %v1362
      %1364 = vmatmul.bf16.gmra.mxu0 %v1296
      %v1365 = vpop.f32.mrf.mxu0
      %v1366 = vadd.f32 %v1263, %v1365
      %v1367 = vpop.f32.mrf.mxu0
      %v1368 = vadd.f32 %v1263, %v1367
      %1369 = vmatmul.bf16.gmra.mxu0 %v1299
      %v1370 = vpop.f32.mrf.mxu0
      %v1371 = vadd.f32 %v1263, %v1370
      %v1372 = vpop.f32.mrf.mxu0
      %v1373 = vadd.f32 %v1263, %v1372
      %1374 = vmatmul.bf16.gmra.mxu0 %v1302
      %v1375 = vpop.f32.mrf.mxu0
      %v1376 = vadd.f32 %v1263, %v1375
      %v1377 = vpop.f32.mrf.mxu0
      %v1378 = vadd.f32 %v1263, %v1377
      %1379 = vmatmul.bf16.gmra.mxu0 %v1305
      %v1380 = vpop.f32.mrf.mxu0
      %v1381 = vadd.f32 %v1263, %v1380
      %v1382 = vpop.f32.mrf.mxu0
      %v1383 = vadd.f32 %v1263, %v1382
      %1384 = vmatmul.bf16.gmra.mxu0 %v1308
      %v1385 = vpop.f32.mrf.mxu0
      %v1386 = vadd.f32 %v1263, %v1385
      %v1387 = vpop.f32.mrf.mxu0
      %v1388 = vadd.f32 %v1263, %v1387
      %1389 = vmatmul.bf16.gmra.mxu0 %v1311
      %v1390 = vpop.f32.mrf.mxu0
      %v1391 = vadd.f32 %v1263, %v1390
      %v1392 = vpop.f32.mrf.mxu0
      %v1393 = vadd.f32 %v1263, %v1392
      %1394 = vmatmul.bf16.gmra.mxu0 %v1314
      %v1395 = vpop.f32.mrf.mxu0
      %v1396 = vadd.f32 %v1263, %v1395
      %v1397 = vpop.f32.mrf.mxu0
      %v1398 = vadd.f32 %v1263, %v1397
      %1399 = vmatmul.bf16.gmra.mxu0 %v1317
      %v1400 = vpop.f32.mrf.mxu0
      %v1401 = vadd.f32 %v1263, %v1400
      %v1402 = vpop.f32.mrf.mxu0
      %v1403 = vadd.f32 %v1263, %v1402
      %1404 = vmatmul.bf16.gmra.mxu0 %v1320
      %v1405 = vpop.f32.mrf.mxu0
      %v1406 = vadd.f32 %v1263, %v1405
      %v1407 = vpop.f32.mrf.mxu0
      %v1408 = vadd.f32 %v1263, %v1407
      %1409 = vmatmul.bf16.gmra.mxu0 %v1323
      %v1410 = vpop.f32.mrf.mxu0
      %v1411 = vadd.f32 %v1263, %v1410
      %v1412 = vpop.f32.mrf.mxu0
      %v1413 = vadd.f32 %v1263, %v1412
      %1414 = vmatmul.bf16.gmra.mxu0 %v1326
      %v1415 = vpop.f32.mrf.mxu0
      %v1416 = vadd.f32 %v1263, %v1415
      %v1417 = vpop.f32.mrf.mxu0
      %v1418 = vadd.f32 %v1263, %v1417
      %1419 = vdwg.mxu0
      %vm1420 = vcmp.lt.f32.partialorder %v1341, 0.0
      %vm1421 = vcmp.lt.f32.partialorder %v1343, 0.0
      %vm1422 = vcmp.lt.f32.partialorder %v1346, 0.0
      %vm1423 = vcmp.lt.f32.partialorder %v1348, 0.0
      %vm1424 = vcmp.lt.f32.partialorder %v1351, 0.0
      %vm1425 = vcmp.lt.f32.partialorder %v1353, 0.0
      %vm1426 = vcmp.lt.f32.partialorder %v1356, 0.0
      %vm1427 = vcmp.lt.f32.partialorder %v1358, 0.0
      %vm1428 = vcmp.lt.f32.partialorder %v1361, 0.0
      %vm1429 = vcmp.lt.f32.partialorder %v1363, 0.0
      %vm1430 = vcmp.lt.f32.partialorder %v1366, 0.0
      %vm1431 = vcmp.lt.f32.partialorder %v1368, 0.0
      %vm1432 = vcmp.lt.f32.partialorder %v1371, 0.0
      %vm1433 = vcmp.lt.f32.partialorder %v1373, 0.0
      %vm1434 = vcmp.lt.f32.partialorder %v1376, 0.0
      %vm1435 = vcmp.lt.f32.partialorder %v1378, 0.0
      %vm1436 = vcmp.lt.f32.partialorder %v1381, 0.0
      %vm1437 = vcmp.lt.f32.partialorder %v1383, 0.0
      %vm1438 = vcmp.lt.f32.partialorder %v1386, 0.0
      %vm1439 = vcmp.lt.f32.partialorder %v1388, 0.0
      %vm1440 = vcmp.lt.f32.partialorder %v1391, 0.0
      %vm1441 = vcmp.lt.f32.partialorder %v1393, 0.0
      %vm1442 = vcmp.lt.f32.partialorder %v1396, 0.0
      %vm1443 = vcmp.lt.f32.partialorder %v1398, 0.0
      %vm1444 = vcmp.lt.f32.partialorder %v1401, 0.0
      %vm1445 = vcmp.lt.f32.partialorder %v1403, 0.0
      %vm1446 = vcmp.lt.f32.partialorder %v1406, 0.0
      %vm1447 = vcmp.lt.f32.partialorder %v1408, 0.0
      %vm1448 = vcmp.lt.f32.partialorder %v1411, 0.0
      %vm1449 = vcmp.lt.f32.partialorder %v1413, 0.0
      %vm1450 = vcmp.lt.f32.partialorder %v1416, 0.0
      %vm1451 = vcmp.lt.f32.partialorder %v1418, 0.0
      %vm1452 = vmand %vm317, %vm1420
      %vm1453 = vmand %vm317, %vm1421
      %vm1454 = vmand %vm317, %vm1422
      %vm1455 = vmand %vm317, %vm1423
      %vm1456 = vmand %vm317, %vm1424
      %vm1457 = vmand %vm317, %vm1425
      %vm1458 = vmand %vm317, %vm1426
      %vm1459 = vmand %vm317, %vm1427
      %vm1460 = vmand %vm317, %vm1428
      %vm1461 = vmand %vm317, %vm1429
      %vm1462 = vmand %vm317, %vm1430
      %vm1463 = vmand %vm317, %vm1431
      %vm1464 = vmand %vm317, %vm1432
      %vm1465 = vmand %vm317, %vm1433
      %vm1466 = vmand %vm317, %vm1434
      %vm1467 = vmand %vm317, %vm1435
      %vm1468 = vmand %vm317, %vm1436
      %vm1469 = vmand %vm317, %vm1437
      %vm1470 = vmand %vm317, %vm1438
      %vm1471 = vmand %vm317, %vm1439
      %vm1472 = vmand %vm317, %vm1440
      %vm1473 = vmand %vm317, %vm1441
      %vm1474 = vmand %vm317, %vm1442
      %vm1475 = vmand %vm317, %vm1443
      %vm1476 = vmand %vm317, %vm1444
      %vm1477 = vmand %vm317, %vm1445
      %vm1478 = vmand %vm317, %vm1446
      %vm1479 = vmand %vm317, %vm1447
      %vm1480 = vmand %vm317, %vm1448
      %vm1481 = vmand %vm317, %vm1449
      %vm1482 = vmand %vm317, %vm1450
      %vm1483 = vmand %vm317, %vm1451
      %v1484 = vmul.f32 %v1341, 0.01
      %v1485 = vmul.f32 %v1343, 0.01
      %v1486 = vmul.f32 %v1346, 0.01
      %v1487 = vmul.f32 %v1348, 0.01
      %v1488 = vmul.f32 %v1351, 0.01
      %v1489 = vmul.f32 %v1353, 0.01
      %v1490 = vmul.f32 %v1356, 0.01
      %v1491 = vmul.f32 %v1358, 0.01
      %v1492 = vmul.f32 %v1361, 0.01
      %v1493 = vmul.f32 %v1363, 0.01
      %v1494 = vmul.f32 %v1366, 0.01
      %v1495 = vmul.f32 %v1368, 0.01
      %v1496 = vmul.f32 %v1371, 0.01
      %v1497 = vmul.f32 %v1373, 0.01
      %v1498 = vmul.f32 %v1376, 0.01
      %v1499 = vmul.f32 %v1378, 0.01
      %v1500 = vmul.f32 %v1381, 0.01
      %v1501 = vmul.f32 %v1383, 0.01
      %v1502 = vmul.f32 %v1386, 0.01
      %v1503 = vmul.f32 %v1388, 0.01
      %v1504 = vmul.f32 %v1391, 0.01
      %v1505 = vmul.f32 %v1393, 0.01
      %v1506 = vmul.f32 %v1396, 0.01
      %v1507 = vmul.f32 %v1398, 0.01
      %v1508 = vmul.f32 %v1401, 0.01
      %v1509 = vmul.f32 %v1403, 0.01
      %v1510 = vmul.f32 %v1406, 0.01
      %v1511 = vmul.f32 %v1408, 0.01
      %v1512 = vmul.f32 %v1411, 0.01
      %v1513 = vmul.f32 %v1413, 0.01
      %v1514 = vmul.f32 %v1416, 0.01
      %v1515 = vmul.f32 %v1418, 0.01
      %v1516 = vsel %vm1452, %v1484, %v1341
      %v1517 = vsel %vm1453, %v1485, %v1343
      %v1518 = vsel %vm1454, %v1486, %v1346
      %v1519 = vsel %vm1455, %v1487, %v1348
      %v1520 = vsel %vm1456, %v1488, %v1351
      %v1521 = vsel %vm1457, %v1489, %v1353
      %v1522 = vsel %vm1458, %v1490, %v1356
      %v1523 = vsel %vm1459, %v1491, %v1358
      %v1524 = vsel %vm1460, %v1492, %v1361
      %v1525 = vsel %vm1461, %v1493, %v1363
      %v1526 = vsel %vm1462, %v1494, %v1366
      %v1527 = vsel %vm1463, %v1495, %v1368
      %v1528 = vsel %vm1464, %v1496, %v1371
      %v1529 = vsel %vm1465, %v1497, %v1373
      %v1530 = vsel %vm1466, %v1498, %v1376
      %v1531 = vsel %vm1467, %v1499, %v1378
      %v1532 = vsel %vm1468, %v1500, %v1381
      %v1533 = vsel %vm1469, %v1501, %v1383
      %v1534 = vsel %vm1470, %v1502, %v1386
      %v1535 = vsel %vm1471, %v1503, %v1388
      %v1536 = vsel %vm1472, %v1504, %v1391
      %v1537 = vsel %vm1473, %v1505, %v1393
      %v1538 = vsel %vm1474, %v1506, %v1396
      %v1539 = vsel %vm1475, %v1507, %v1398
      %v1540 = vsel %vm1476, %v1508, %v1401
      %v1541 = vsel %vm1477, %v1509, %v1403
      %v1542 = vsel %vm1478, %v1510, %v1406
      %v1543 = vsel %vm1479, %v1511, %v1408
      %v1544 = vsel %vm1480, %v1512, %v1411
      %v1545 = vsel %vm1481, %v1513, %v1413
      %v1546 = vsel %vm1482, %v1514, %v1416
      %v1547 = vsel %vm1483, %v1515, %v1418
      %v1548 = vpack.c.bf16 %v1517, %v1516
      %v1549 = vpack.c.bf16 %v1519, %v1518
      %v1550 = vpack.c.bf16 %v1521, %v1520
      %v1551 = vpack.c.bf16 %v1523, %v1522
      %v1552 = vpack.c.bf16 %v1525, %v1524
      %v1553 = vpack.c.bf16 %v1527, %v1526
      %v1554 = vpack.c.bf16 %v1529, %v1528
      %v1555 = vpack.c.bf16 %v1531, %v1530
      %v1556 = vpack.c.bf16 %v1533, %v1532
      %v1557 = vpack.c.bf16 %v1535, %v1534
      %v1558 = vpack.c.bf16 %v1537, %v1536
      %v1559 = vpack.c.bf16 %v1539, %v1538
      %v1560 = vpack.c.bf16 %v1541, %v1540
      %v1561 = vpack.c.bf16 %v1543, %v1542
      %v1562 = vpack.c.bf16 %v1545, %v1544
      %v1563 = vpack.c.bf16 %v1547, %v1546
      %v1564 = vld [vmem:[%s5] sm:$0xf]
      %v1565 = vld [vmem:[%s5 + $0x4] sm:$0xf]
      %v1566 = vld [vmem:[%s5 + $0x8] sm:$0xf]
      %v1567 = vld [vmem:[%s5 + $0xc] sm:$0xf]
      %v1568 = vld [vmem:[%s5 + $0x10] sm:$0xf]
      %v1569 = vld [vmem:[%s6] sm:$0x1]
      %v1571 = vperm.slane %v1569, 0
      %v1578 = vunpack.c.l.b16 %v1564
      %v1579 = vunpack.c.l.b16 %v1565
      %v1580 = vunpack.c.l.b16 %v1566
      %v1581 = vunpack.c.l.b16 %v1567
      %v1582 = vunpack.c.l.b16 %v1568
      %v1583 = vpack.c.b16 %v1579, %v1578
      %v1584 = vpack.c.b16 %v1581, %v1580
      %v1585 = vpack.c.b16 %v1582, %v1582
      %v1589 = vsel %vm658, %v1548, 0
      %v1592 = vsel %vm658, %v1549, 0
      %v1595 = vsel %vm658, %v1550, 0
      %v1598 = vsel %vm658, %v1551, 0
      %v1601 = vsel %vm658, %v1552, 0
      %v1604 = vsel %vm658, %v1553, 0
      %v1607 = vsel %vm658, %v1554, 0
      %v1610 = vsel %vm658, %v1555, 0
      %v1613 = vsel %vm658, %v1556, 0
      %v1616 = vsel %vm658, %v1557, 0
      %v1619 = vsel %vm658, %v1558, 0
      %v1622 = vsel %vm658, %v1559, 0
      %v1625 = vsel %vm658, %v1560, 0
      %v1628 = vsel %vm658, %v1561, 0
      %v1631 = vsel %vm658, %v1562, 0
      %v1634 = vsel %vm658, %v1563, 0
      %v1637 = vsel %vm707, %v1585, 0
      %1639 = vmatpush.bf16.msra.mxu0 0
      %1640 = vmatpush.bf16.msra.mxu0 0
      %1641 = vmatpush.bf16.msra.mxu0 0
      %1642 = vmatpush.bf16.msra.mxu0 0
      %1643 = vmatpush.bf16.msra.mxu0 0
      %1644 = vmatpush.bf16.msra.mxu0 %v1637
      %1645 = vmatpush.bf16.msra.mxu0 %v1584
      %1646 = vmatpush.bf16.msra.mxu0 %v1583
      %1647 = vmatmul.bf16.gmra.mxu0 %v1589
      %v1648 = vpop.f32.mrf.mxu0
      %v1649 = vadd.f32 %v1571, %v1648
      %v1650 = vpop.f32.mrf.mxu0
      %v1651 = vadd.f32 %v1571, %v1650
      %1652 = vmatmul.bf16.gmra.mxu0 %v1592
      %v1653 = vpop.f32.mrf.mxu0
      %v1654 = vadd.f32 %v1571, %v1653
      %v1655 = vpop.f32.mrf.mxu0
      %v1656 = vadd.f32 %v1571, %v1655
      %1657 = vmatmul.bf16.gmra.mxu0 %v1595
      %v1658 = vpop.f32.mrf.mxu0
      %v1659 = vadd.f32 %v1571, %v1658
      %v1660 = vpop.f32.mrf.mxu0
      %v1661 = vadd.f32 %v1571, %v1660
      %1662 = vmatmul.bf16.gmra.mxu0 %v1598
      %v1663 = vpop.f32.mrf.mxu0
      %v1664 = vadd.f32 %v1571, %v1663
      %v1665 = vpop.f32.mrf.mxu0
      %v1666 = vadd.f32 %v1571, %v1665
      %1667 = vmatmul.bf16.gmra.mxu0 %v1601
      %v1668 = vpop.f32.mrf.mxu0
      %v1669 = vadd.f32 %v1571, %v1668
      %v1670 = vpop.f32.mrf.mxu0
      %v1671 = vadd.f32 %v1571, %v1670
      %1672 = vmatmul.bf16.gmra.mxu0 %v1604
      %v1673 = vpop.f32.mrf.mxu0
      %v1674 = vadd.f32 %v1571, %v1673
      %v1675 = vpop.f32.mrf.mxu0
      %v1676 = vadd.f32 %v1571, %v1675
      %1677 = vmatmul.bf16.gmra.mxu0 %v1607
      %v1678 = vpop.f32.mrf.mxu0
      %v1679 = vadd.f32 %v1571, %v1678
      %v1680 = vpop.f32.mrf.mxu0
      %v1681 = vadd.f32 %v1571, %v1680
      %1682 = vmatmul.bf16.gmra.mxu0 %v1610
      %v1683 = vpop.f32.mrf.mxu0
      %v1684 = vadd.f32 %v1571, %v1683
      %v1685 = vpop.f32.mrf.mxu0
      %v1686 = vadd.f32 %v1571, %v1685
      %1687 = vmatmul.bf16.gmra.mxu0 %v1613
      %v1688 = vpop.f32.mrf.mxu0
      %v1689 = vadd.f32 %v1571, %v1688
      %v1690 = vpop.f32.mrf.mxu0
      %v1691 = vadd.f32 %v1571, %v1690
      %1692 = vmatmul.bf16.gmra.mxu0 %v1616
      %v1693 = vpop.f32.mrf.mxu0
      %v1694 = vadd.f32 %v1571, %v1693
      %v1695 = vpop.f32.mrf.mxu0
      %v1696 = vadd.f32 %v1571, %v1695
      %1697 = vmatmul.bf16.gmra.mxu0 %v1619
      %v1698 = vpop.f32.mrf.mxu0
      %v1699 = vadd.f32 %v1571, %v1698
      %v1700 = vpop.f32.mrf.mxu0
      %v1701 = vadd.f32 %v1571, %v1700
      %1702 = vmatmul.bf16.gmra.mxu0 %v1622
      %v1703 = vpop.f32.mrf.mxu0
      %v1704 = vadd.f32 %v1571, %v1703
      %v1705 = vpop.f32.mrf.mxu0
      %v1706 = vadd.f32 %v1571, %v1705
      %1707 = vmatmul.bf16.gmra.mxu0 %v1625
      %v1708 = vpop.f32.mrf.mxu0
      %v1709 = vadd.f32 %v1571, %v1708
      %v1710 = vpop.f32.mrf.mxu0
      %v1711 = vadd.f32 %v1571, %v1710
      %1712 = vmatmul.bf16.gmra.mxu0 %v1628
      %v1713 = vpop.f32.mrf.mxu0
      %v1714 = vadd.f32 %v1571, %v1713
      %v1715 = vpop.f32.mrf.mxu0
      %v1716 = vadd.f32 %v1571, %v1715
      %1717 = vmatmul.bf16.gmra.mxu0 %v1631
      %v1718 = vpop.f32.mrf.mxu0
      %v1719 = vadd.f32 %v1571, %v1718
      %v1720 = vpop.f32.mrf.mxu0
      %v1721 = vadd.f32 %v1571, %v1720
      %1722 = vmatmul.bf16.gmra.mxu0 %v1634
      %v1723 = vpop.f32.mrf.mxu0
      %v1724 = vadd.f32 %v1571, %v1723
      %v1725 = vpop.f32.mrf.mxu0
      %v1726 = vadd.f32 %v1571, %v1725
      %1727 = vdwg.mxu0
      %vm1728 = vcmp.gt.f32.partialorder %v283, 1.0
      %vm1729 = vcmp.gt.f32.partialorder %v284, 1.0
      %vm1730 = vcmp.gt.f32.partialorder %v285, 1.0
      %vm1731 = vcmp.gt.f32.partialorder %v286, 1.0
      %vm1732 = vcmp.gt.f32.partialorder %v287, 1.0
      %vm1733 = vcmp.gt.f32.partialorder %v288, 1.0
      %vm1734 = vcmp.gt.f32.partialorder %v289, 1.0
      %vm1735 = vcmp.gt.f32.partialorder %v290, 1.0
      %vm1736 = vcmp.gt.f32.partialorder %v291, 1.0
      %vm1737 = vcmp.gt.f32.partialorder %v292, 1.0
      %vm1738 = vcmp.gt.f32.partialorder %v293, 1.0
      %vm1739 = vcmp.gt.f32.partialorder %v294, 1.0
      %vm1740 = vcmp.gt.f32.partialorder %v295, 1.0
      %vm1741 = vcmp.gt.f32.partialorder %v296, 1.0
      %vm1742 = vcmp.gt.f32.partialorder %v297, 1.0
      %vm1743 = vcmp.gt.f32.partialorder %v298, 1.0
      %vm1744 = vcmp.gt.f32.partialorder %v299, 1.0
      %vm1745 = vcmp.gt.f32.partialorder %v300, 1.0
      %vm1746 = vcmp.gt.f32.partialorder %v301, 1.0
      %vm1747 = vcmp.gt.f32.partialorder %v302, 1.0
      %vm1748 = vcmp.gt.f32.partialorder %v303, 1.0
      %vm1749 = vcmp.gt.f32.partialorder %v304, 1.0
      %vm1750 = vcmp.gt.f32.partialorder %v305, 1.0
      %vm1751 = vcmp.gt.f32.partialorder %v306, 1.0
      %vm1752 = vcmp.gt.f32.partialorder %v307, 1.0
      %vm1753 = vcmp.gt.f32.partialorder %v308, 1.0
      %vm1754 = vcmp.gt.f32.partialorder %v309, 1.0
      %vm1755 = vcmp.gt.f32.partialorder %v310, 1.0
      %vm1756 = vcmp.gt.f32.partialorder %v311, 1.0
      %vm1757 = vcmp.gt.f32.partialorder %v312, 1.0
      %vm1758 = vcmp.gt.f32.partialorder %v313, 1.0
      %vm1759 = vcmp.gt.f32.partialorder %v314, 1.0
      %v1760 = vadd.f32 %v1649, %v283
      %v1761 = vadd.f32 %v1651, %v284
      %v1762 = vadd.f32 %v1654, %v285
      %v1763 = vadd.f32 %v1656, %v286
      %v1764 = vadd.f32 %v1659, %v287
      %v1765 = vadd.f32 %v1661, %v288
      %v1766 = vadd.f32 %v1664, %v289
      %v1767 = vadd.f32 %v1666, %v290
      %v1768 = vadd.f32 %v1669, %v291
      %v1769 = vadd.f32 %v1671, %v292
      %v1770 = vadd.f32 %v1674, %v293
      %v1771 = vadd.f32 %v1676, %v294
      %v1772 = vadd.f32 %v1679, %v295
      %v1773 = vadd.f32 %v1681, %v296
      %v1774 = vadd.f32 %v1684, %v297
      %v1775 = vadd.f32 %v1686, %v298
      %v1776 = vadd.f32 %v1689, %v299
      %v1777 = vadd.f32 %v1691, %v300
      %v1778 = vadd.f32 %v1694, %v301
      %v1779 = vadd.f32 %v1696, %v302
      %v1780 = vadd.f32 %v1699, %v303
      %v1781 = vadd.f32 %v1701, %v304
      %v1782 = vadd.f32 %v1704, %v305
      %v1783 = vadd.f32 %v1706, %v306
      %v1784 = vadd.f32 %v1709, %v307
      %v1785 = vadd.f32 %v1711, %v308
      %v1786 = vadd.f32 %v1714, %v309
      %v1787 = vadd.f32 %v1716, %v310
      %v1788 = vadd.f32 %v1719, %v311
      %v1789 = vadd.f32 %v1721, %v312
      %v1790 = vadd.f32 %v1724, %v313
      %v1791 = vadd.f32 %v1726, %v314
      %v1792 = vsel %vm1728, %v283, %v1760
      %v1793 = vsel %vm1729, %v284, %v1761
      %v1794 = vsel %vm1730, %v285, %v1762
      %v1795 = vsel %vm1731, %v286, %v1763
      %v1796 = vsel %vm1732, %v287, %v1764
      %v1797 = vsel %vm1733, %v288, %v1765
      %v1798 = vsel %vm1734, %v289, %v1766
      %v1799 = vsel %vm1735, %v290, %v1767
      %v1800 = vsel %vm1736, %v291, %v1768
      %v1801 = vsel %vm1737, %v292, %v1769
      %v1802 = vsel %vm1738, %v293, %v1770
      %v1803 = vsel %vm1739, %v294, %v1771
      %v1804 = vsel %vm1740, %v295, %v1772
      %v1805 = vsel %vm1741, %v296, %v1773
      %v1806 = vsel %vm1742, %v297, %v1774
      %v1807 = vsel %vm1743, %v298, %v1775
      %v1808 = vsel %vm1744, %v299, %v1776
      %v1809 = vsel %vm1745, %v300, %v1777
      %v1810 = vsel %vm1746, %v301, %v1778
      %v1811 = vsel %vm1747, %v302, %v1779
      %v1812 = vsel %vm1748, %v303, %v1780
      %v1813 = vsel %vm1749, %v304, %v1781
      %v1814 = vsel %vm1750, %v305, %v1782
      %v1815 = vsel %vm1751, %v306, %v1783
      %v1816 = vsel %vm1752, %v307, %v1784
      %v1817 = vsel %vm1753, %v308, %v1785
      %v1818 = vsel %vm1754, %v309, %v1786
      %v1819 = vsel %vm1755, %v310, %v1787
      %v1820 = vsel %vm1756, %v311, %v1788
      %v1821 = vsel %vm1757, %v312, %v1789
      %v1822 = vsel %vm1758, %v313, %v1790
      %v1823 = vsel %vm1759, %v314, %v1791
      %vm1824 = vcmask 23552
      %1825 = vst.msk [vmem:[%s280] sm:$0xff] %vm1824, %v1792
      %1826 = vst.msk [vmem:[%s280 + $0x8] sm:$0xff] %vm1824, %v1793
      %1827 = vst.msk [vmem:[%s280 + $0x10] sm:$0xff] %vm1824, %v1794
      %1828 = vst.msk [vmem:[%s280 + $0x18] sm:$0xff] %vm1824, %v1795
      %1829 = vst.msk [vmem:[%s280 + $0x20] sm:$0xff] %vm1824, %v1796
      %1830 = vst.msk [vmem:[%s280 + $0x28] sm:$0xff] %vm1824, %v1797
      %1831 = vst.msk [vmem:[%s280 + $0x30] sm:$0xff] %vm1824, %v1798
      %1832 = vst.msk [vmem:[%s280 + $0x38] sm:$0xff] %vm1824, %v1799
      %1833 = vst.msk [vmem:[%s280 + $0x40] sm:$0xff] %vm1824, %v1800
      %1834 = vst.msk [vmem:[%s280 + $0x48] sm:$0xff] %vm1824, %v1801
      %1835 = vst.msk [vmem:[%s280 + $0x50] sm:$0xff] %vm1824, %v1802
      %1836 = vst.msk [vmem:[%s280 + $0x58] sm:$0xff] %vm1824, %v1803
      %1837 = vst.msk [vmem:[%s280 + $0x60] sm:$0xff] %vm1824, %v1804
      %1838 = vst.msk [vmem:[%s280 + $0x68] sm:$0xff] %vm1824, %v1805
      %1839 = vst.msk [vmem:[%s280 + $0x70] sm:$0xff] %vm1824, %v1806
      %1840 = vst.msk [vmem:[%s280 + $0x78] sm:$0xff] %vm1824, %v1807
      %1841 = vst.msk [vmem:[%s280 + $0x80] sm:$0xff] %vm1824, %v1808
      %1842 = vst.msk [vmem:[%s280 + $0x88] sm:$0xff] %vm1824, %v1809
      %1843 = vst.msk [vmem:[%s280 + $0x90] sm:$0xff] %vm1824, %v1810
      %1844 = vst.msk [vmem:[%s280 + $0x98] sm:$0xff] %vm1824, %v1811
      %1845 = vst.msk [vmem:[%s280 + $0xa0] sm:$0xff] %vm1824, %v1812
      %1846 = vst.msk [vmem:[%s280 + $0xa8] sm:$0xff] %vm1824, %v1813
      %1847 = vst.msk [vmem:[%s280 + $0xb0] sm:$0xff] %vm1824, %v1814
      %1848 = vst.msk [vmem:[%s280 + $0xb8] sm:$0xff] %vm1824, %v1815
      %1849 = vst.msk [vmem:[%s280 + $0xc0] sm:$0xff] %vm1824, %v1816
      %1850 = vst.msk [vmem:[%s280 + $0xc8] sm:$0xff] %vm1824, %v1817
      %1851 = vst.msk [vmem:[%s280 + $0xd0] sm:$0xff] %vm1824, %v1818
      %1852 = vst.msk [vmem:[%s280 + $0xd8] sm:$0xff] %vm1824, %v1819
      %1853 = vst.msk [vmem:[%s280 + $0xe0] sm:$0xff] %vm1824, %v1820
      %1854 = vst.msk [vmem:[%s280 + $0xe8] sm:$0xff] %vm1824, %v1821
      %1855 = vst.msk [vmem:[%s280 + $0xf0] sm:$0xff] %vm1824, %v1822
      %1856 = vst.msk [vmem:[%s280 + $0xf8] sm:$0xff] %vm1824, %v1823
      %s1857 = smul.u32 32, %s18
      %p1858 = scmp.lt.s32.totalorder %s1857, 63
      %s1859 = scalar_select %p1858, %s1857, 63
      %s1860 = smul.addr %s1859, 8
      %s1861 = scalar_lea.vmem %s7, %s1860
      // Predicated region
      $region49: #{tpu_custom_call.1} parent=47 // pred_check
        %p1862 = pneg %p188
      $region50: #{tpu_custom_call.1} parent=47 // pred_check_branch
        %1864 = sbr.rel (%p1862) target = $region52
      $region51: #{tpu_custom_call.1} parent=47 // pred_region
        %s1865 = smul.u32 32, %s18
      $region52: #{tpu_custom_call.1} parent=47 // pred_fallthru
        _
    $region48: #{tpu_custom_call.1} parent=5 // pred_fallthru
      _
    %p1866 = scmp.le.s32.totalorder 2, %s13
    // Predicated region
    $region53: #{tpu_custom_call.1} parent=5 // pred_check
      %p1867 = pneg %p1866
    $region54: #{tpu_custom_call.1} parent=5 // pred_check_branch
      %1869 = sbr.rel (%p1867) target = $region56
    $region55: #{tpu_custom_call.1} parent=5 // pred_region
      %s1870 = ssub.s32 %s13, 2
      // Predicated region
      $region57: #{tpu_custom_call.1} parent=55 // pred_check
        %p1871 = pneg %p194
      $region58: #{tpu_custom_call.1} parent=55 // pred_check_branch
        %1873 = sbr.rel (%p1871) target = $region60
      $region59: #{tpu_custom_call.1} parent=55 // pred_region
        %s1874 = smul.u32 32, %s19
        %p1875 = scmp.lt.s32.totalorder %s1874, 63
        %s1876 = scalar_select %p1875, %s1874, 63
        %s1877 = smul.addr %s1876, 8
        %s1878 = scalar_lea.vmem %s7, %s1877
      $region60: #{tpu_custom_call.1} parent=55 // pred_fallthru
        _
    $region56: #{tpu_custom_call.1} parent=5 // pred_fallthru
      _
  $region6: #{tpu_custom_call.1} parent=0 // loop_footer
    %s17 = sadd.s32 1, %s13
  $region7: #{tpu_custom_call.1} parent=0 // loop_footer_branch
    %12 = sbr.rel target = $region3
  $region8: #{tpu_custom_call.1} parent=0 // loop_exit
    _

</llo_original>
